<compile_context>
chip_gen: v5e
topology: v5e:2x2
jax: 0.10.0
libtpu: 0.0.40
codegen_flags: <defaults>
</compile_context>

<pallas_src>
import functools
import math

import jax
import jax.numpy as jnp
from jax import lax
from jax.experimental import pallas as pl
from jax.experimental.pallas import tpu as pltpu


def _dw_pw_stats_kernel(xp_ref, wdw_ref, wpw_ref, z_ref, s1_ref, s2_ref,
                        *, k, th, w, cpad):
    # xp_ref : (1, H+2p, W+2p, Cpad) padded image of the current batch element.
    #          Its block index only depends on the batch grid axis, so it stays
    #          resident in VMEM across all H-tiles of that image (one DMA/image).
    # wdw_ref: (k*k, Cpad)  depthwise taps, f32 (VPU path).
    # wpw_ref: (Cpad, Cpad) pointwise weight laid out (Cin, Cout), bf16 (MXU).
    # z_ref  : (th*w, Cpad) pre-BN activation tile, f32, lane-dense last dim.
    # s1/s2  : (1, 1, Cpad) per-image running sum / sum-of-squares (resident
    #          across the inner "arbitrary" grid axis).
    t = pl.program_id(1)
    r0 = t * th                       # first padded-input row of this H tile

    wdw = wdw_ref[...]                # load all taps once: (k*k, Cpad)

    # Depthwise conv (stride 1): k*k shifted windows sliced directly from the
    # ref (plain strided vector loads; no value-relayout per tap).
    acc = xp_ref[0, pl.ds(r0, th), pl.ds(0, w), :] * wdw[0]
    for u in range(k):
        for v in range(k):
            if u == 0 and v == 0:
                continue
            win = xp_ref[0, pl.ds(r0 + u, th), pl.ds(v, w), :]   # (th, w, Cpad)
            acc = acc + win * wdw[u * k + v]

    # Pointwise 1x1 conv == channel matmul on the MXU (bf16 in, f32 acc).
    # (th, w, Cpad) -> (th*w, Cpad) is layout-preserving when w % 8 == 0.
    z = jnp.dot(acc.reshape(th * w, cpad).astype(jnp.bfloat16), wpw_ref[...],
                preferred_element_type=jnp.float32)
    z_ref[...] = z

    # Partial BN statistics, accumulated across the H-tile ("arbitrary") axis.
    @pl.when(t == 0)
    def _():
        s1_ref[...] = jnp.zeros_like(s1_ref)
        s2_ref[...] = jnp.zeros_like(s2_ref)

    s1_ref[...] += jnp.sum(z, axis=0).reshape(1, 1, cpad)
    s2_ref[...] += jnp.sum(z * z, axis=0).reshape(1, 1, cpad)


def _bn_hswish_kernel(z_ref, scale_ref, bias_ref, y_ref):
    # BN folded into one FMA per element, then Hardswish: x*relu6(x+3)/6.
    zn = z_ref[...] * scale_ref[...] + bias_ref[...]
    y_ref[...] = zn * jnp.clip(zn + 3.0, 0.0, 6.0) * (1.0 / 6.0)


def _pick_h_tile(h, w, target_rows=2048):
    cands = [d for d in range(1, h + 1) if h % d == 0 and (d * w) % 8 == 0]
    assert cands, "need an H divisor d with (d*W) % 8 == 0"
    fitting = [d for d in cands if d * w <= target_rows]
    return max(fitting) if fitting else min(cands)


def _pick_ew_rows(n_blocks, tr, cpad, target_bytes=2 * 1024 * 1024):
    # Row tile for the elementwise pass: a multiple of the pass-1 tile `tr`
    # (so it always divides nr and keeps rows % 8 == 0), as large as fits the
    # per-block byte budget.  Bigger blocks amortize the ~0.35us/step overhead.
    best_m = 1
    for m in range(1, n_blocks + 1):
        if n_blocks % m == 0 and m * tr * cpad * 4 <= target_bytes:
            best_m = m
    return best_m * tr


def dwconv2d_bn(x_nchw, w_dw, w_pw, gamma, beta, *, kernel_size, stride=1,
                eps=1e-5, h_tile=None):
    """DWConv2d_BN forward. Input/output are NCHW float32."""
    assert stride == 1, "stride=1 only"
    # TODO(synk): stride > 1 needs strided window slices and a strided out spec.
    n, c, h, w = x_nchw.shape
    k = kernel_size
    p = (k - 1) // 2
    cpad = ((c + 127) // 128) * 128          # channel dim on the 128-lane axis

    th = h_tile if h_tile is not None else _pick_h_tile(h, w)
    assert h % th == 0 and (th * w) % 8 == 0, (h, w, th)
    n_ht = h // th
    tr = th * w                              # pixel-rows per pass-1 tile
    nr = n * h * w                           # total pixel-rows

    f32 = jnp.float32
    # NCHW -> NHWC, spatial zero-pad by p, channel zero-pad to Cpad (one fused
    # XLA copy under jit).
    # TODO(synk): for very large H/W, use element-indexed halo input blocks (or
    # manual DMA) plus in-kernel border masks so neither the pad copy nor the
    # full image in VMEM is needed.
    x_nhwc = jnp.transpose(x_nchw, (0, 2, 3, 1)).astype(f32)
    xp = jnp.pad(x_nhwc, ((0, 0), (p, p), (p, p), (0, cpad - c)))

    # Depthwise weight (C,1,k,k) -> (k*k, Cpad), f32 (VPU keeps f32: v5e-safe).
    wdw = jnp.transpose(w_dw[:, 0, :, :], (1, 2, 0)).reshape(k * k, c)
    wdw = jnp.pad(wdw, ((0, 0), (0, cpad - c))).astype(f32)
    # Pointwise weight (Cout,Cin,1,1) -> (Cin_pad, Cout_pad), bf16 for the MXU.
    wpw = jnp.pad(jnp.transpose(w_pw[:, :, 0, 0], (1, 0)),
                  ((0, cpad - c), (0, cpad - c))).astype(jnp.bfloat16)
    gamma_p = jnp.pad(gamma.astype(f32), (0, cpad - c))
    beta_p = jnp.pad(beta.astype(f32), (0, cpad - c))

    hp, wp = h + 2 * p, w + 2 * p
    kern1 = functools.partial(_dw_pw_stats_kernel, k=k, th=th, w=w, cpad=cpad)
    # 32 MiB scoped VMEM is safe on every generation (v5e default is only
    # 16 MiB; v7x physical is 64 MiB so keep headroom).
    cparams1 = pltpu.CompilerParams(
        dimension_semantics=("parallel", "arbitrary"),
        vmem_limit_bytes=32 * 1024 * 1024)
    z2d, s1, s2 = pl.pallas_call(
        kern1,
        grid=(n, n_ht),
        in_specs=[
            pl.BlockSpec((1, hp, wp, cpad), lambda i, t: (i, 0, 0, 0)),
            pl.BlockSpec((k * k, cpad), lambda i, t: (0, 0)),
            pl.BlockSpec((cpad, cpad), lambda i, t: (0, 0)),
        ],
        out_specs=(
            pl.BlockSpec((tr, cpad), lambda i, t: (i * n_ht + t, 0)),
            pl.BlockSpec((1, 1, cpad), lambda i, t: (i, 0, 0)),
            pl.BlockSpec((1, 1, cpad), lambda i, t: (i, 0, 0)),
        ),
        out_shape=(
            jax.ShapeDtypeStruct((nr, cpad), f32),
            jax.ShapeDtypeStruct((n, 1, cpad), f32),
            jax.ShapeDtypeStruct((n, 1, cpad), f32),
        ),
        compiler_params=cparams1,
    )(xp, wdw, wpw)

    # Fold training-mode BN (biased batch variance over N*H*W) into a single
    # per-channel scale/bias -- C-sized math, negligible.
    m = float(n * h * w)
    mean = jnp.sum(s1, axis=(0, 1)) / m
    var = jnp.maximum(jnp.sum(s2, axis=(0, 1)) / m - mean * mean, 0.0)
    inv = lax.rsqrt(var + eps)
    scale = (gamma_p * inv).reshape(1, cpad)
    bias = (beta_p - mean * gamma_p * inv).reshape(1, cpad)

    # Pass 2 tile: independent of pass-1 tiling, as large as the VMEM budget
    # allows (memory-bound elementwise pass; big blocks -> near HBM roofline).
    tr2 = _pick_ew_rows(nr // tr, tr, cpad)
    cparams2 = pltpu.CompilerParams(
        dimension_semantics=("parallel",),
        vmem_limit_bytes=32 * 1024 * 1024)
    y2d = pl.pallas_call(
        _bn_hswish_kernel,
        grid=(nr // tr2,),
        in_specs=[
            pl.BlockSpec((tr2, cpad), lambda i: (i, 0)),
            pl.BlockSpec((1, cpad), lambda i: (0, 0)),
            pl.BlockSpec((1, cpad), lambda i: (0, 0)),
        ],
        out_specs=pl.BlockSpec((tr2, cpad), lambda i: (i, 0)),
        out_shape=jax.ShapeDtypeStruct((nr, cpad), f32),
        compiler_params=cparams2,
    )(z2d, scale, bias)

    y = y2d.reshape(n, h, w, cpad)[..., :c]
    return jnp.transpose(y, (0, 3, 1, 2))


def _reference(x, w_dw, w_pw, gamma, beta, *, kernel_size, eps=1e-5):
    """Pure-JAX reference of the PyTorch forward (training-mode BN).
    Mirrors the kernel's bf16 MXU inputs for the 1x1 conv (f32 accumulation);
    the pure-f32 PyTorch result differs from this only by that bf16 rounding."""
    p = (kernel_size - 1) // 2
    c = x.shape[1]
    y = lax.conv_general_dilated(
        x, w_dw, window_strides=(1, 1), padding=((p, p), (p, p)),
        dimension_numbers=("NCHW", "OIHW", "NCHW"), feature_group_count=c)
    y = lax.conv_general_dilated(
        y.astype(jnp.bfloat16), w_pw.astype(jnp.bfloat16),
        window_strides=(1, 1), padding="VALID",
        dimension_numbers=("NCHW", "OIHW", "NCHW"),
        preferred_element_type=jnp.float32)
    mean = jnp.mean(y, axis=(0, 2, 3), keepdims=True)
    var = jnp.mean(jnp.square(y - mean), axis=(0, 2, 3), keepdims=True)
    yn = (y - mean) / jnp.sqrt(var + eps) * gamma.reshape(1, -1, 1, 1) \
        + beta.reshape(1, -1, 1, 1)
    return yn * jnp.clip(yn + 3.0, 0.0, 6.0) / 6.0


if __name__ == "__main__":
    N, C, H, W = 2, 32, 16, 16   # in_ch == out_ch == 32 (depthwise, groups=out_ch)
    K = 3                        # kernel_size

    key = jax.random.PRNGKey(0)
    kx, kdw, kpw = jax.random.split(key, 3)
    x = jax.random.normal(kx, (N, C, H, W), jnp.float32)

    # Mirror the module's __init__: conv weights ~ N(0, sqrt(2/(kh*kw*out_ch))),
    # BN gamma=1 (bn_weight_init=1), beta=0.
    std_dw = math.sqrt(2.0 / (K * K * C))
    std_pw = math.sqrt(2.0 / (1 * 1 * C))
    w_dw = std_dw * jax.random.normal(kdw, (C, 1, K, K), jnp.float32)
    w_pw = std_pw * jax.random.normal(kpw, (C, C, 1, 1), jnp.float32)
    gamma = jnp.ones((C,), jnp.float32)
    beta = jnp.zeros((C,), jnp.float32)

    # h_tile=8 -> 2 H-tiles per image: exercises the multi-tile grid and the
    # cross-tile BN-statistics accumulation path.
    fwd = jax.jit(functools.partial(dwconv2d_bn, kernel_size=K, stride=1,
                                    h_tile=8))
    y = jax.block_until_ready(fwd(x, w_dw, w_pw, gamma, beta))
    assert y.shape == (N, C, H, W)

    y_ref = _reference(x, w_dw, w_pw, gamma, beta, kernel_size=K)
    err = float(jnp.max(jnp.abs(y - y_ref)))
    assert jnp.allclose(y, y_ref, atol=5e-3, rtol=5e-3), f"max abs err {err}"
    print("KERNEL_OK")
</pallas_src>

<mosaic_0001>
module attributes {stable_mosaic.version = 11 : i64} {
  func.func @_dw_pw_stats_kernel(%arg0: i32, %arg1: i32, %arg2: memref<1x18x18x128xf32, #tpu.memory_space<vmem>>, %arg3: memref<9x128xf32, #tpu.memory_space<vmem>>, %arg4: memref<128x128xbf16, #tpu.memory_space<vmem>>, %arg5: memref<128x128xf32, #tpu.memory_space<vmem>>, %arg6: memref<1x1x128xf32, #tpu.memory_space<vmem>>, %arg7: memref<1x1x128xf32, #tpu.memory_space<vmem>>) attributes {dimension_semantics = [#tpu.dimension_semantics<parallel>, #tpu.dimension_semantics<arbitrary>], iteration_bounds = array<i64: 2, 2>, scalar_prefetch = 0 : i64, scratch_operands = 0 : i64, tpu.core_type = #tpu.core_type<tc>, window_params = [{transform_indices = @transform_0, window_bounds = array<i64: 1, 18, 18, 128>}, {pipeline_mode = #tpu.pipeline_mode<synchronous>, transform_indices = @transform_1, window_bounds = array<i64: 9, 128>}, {pipeline_mode = #tpu.pipeline_mode<synchronous>, transform_indices = @transform_2, window_bounds = array<i64: 128, 128>}, {transform_indices = @transform_3, window_bounds = array<i64: 128, 128>}, {transform_indices = @transform_4, window_bounds = array<i64: 1, 1, 128>}, {transform_indices = @transform_5, window_bounds = array<i64: 1, 1, 128>}]} {
    %c8_i32 = arith.constant 8 : i32
    %0 = arith.muli %arg1, %c8_i32 : i32
    %c0 = arith.constant 0 : index
    %c0_0 = arith.constant 0 : index
    %1 = vector.load %arg3[%c0, %c0_0] : memref<9x128xf32, #tpu.memory_space<vmem>>, vector<9x128xf32>
    %c0_1 = arith.constant 0 : index
    %2 = arith.index_cast %0 : i32 to index
    %c0_2 = arith.constant 0 : index
    %c0_3 = arith.constant 0 : index
    %3 = vector.load %arg2[%c0_1, %2, %c0_2, %c0_3] : memref<1x18x18x128xf32, #tpu.memory_space<vmem>>, vector<1x8x16x128xf32>
    %4 = vector.shape_cast %3 : vector<1x8x16x128xf32> to vector<8x16x128xf32>
    %5 = vector.extract_strided_slice %1 {offsets = [0, 0], sizes = [1, 128], strides = [1, 1]} : vector<9x128xf32> to vector<1x128xf32>
    %6 = vector.shape_cast %5 : vector<1x128xf32> to vector<128xf32>
    %7 = vector.shape_cast %6 : vector<128xf32> to vector<1x1x128xf32>
    %8 = vector.broadcast %7 : vector<1x1x128xf32> to vector<8x16x128xf32>
    %9 = arith.mulf %4, %8 : vector<8x16x128xf32>
    %c0_i32 = arith.constant 0 : i32
    %10 = arith.addi %0, %c0_i32 : i32
    %c0_4 = arith.constant 0 : index
    %11 = arith.index_cast %10 : i32 to index
    %c1 = arith.constant 1 : index
    %c0_5 = arith.constant 0 : index
    %12 = vector.load %arg2[%c0_4, %11, %c1, %c0_5] : memref<1x18x18x128xf32, #tpu.memory_space<vmem>>, vector<1x8x16x128xf32>
    %13 = vector.shape_cast %12 : vector<1x8x16x128xf32> to vector<8x16x128xf32>
    %14 = vector.extract_strided_slice %1 {offsets = [1, 0], sizes = [1, 128], strides = [1, 1]} : vector<9x128xf32> to vector<1x128xf32>
    %15 = vector.shape_cast %14 : vector<1x128xf32> to vector<128xf32>
    %16 = vector.shape_cast %15 : vector<128xf32> to vector<1x1x128xf32>
    %17 = vector.broadcast %16 : vector<1x1x128xf32> to vector<8x16x128xf32>
    %18 = arith.mulf %13, %17 : vector<8x16x128xf32>
    %19 = arith.addf %9, %18 : vector<8x16x128xf32>
    %c0_i32_6 = arith.constant 0 : i32
    %20 = arith.addi %0, %c0_i32_6 : i32
    %c0_7 = arith.constant 0 : index
    %21 = arith.index_cast %20 : i32 to index
    %c2 = arith.constant 2 : index
    %c0_8 = arith.constant 0 : index
    %22 = vector.load %arg2[%c0_7, %21, %c2, %c0_8] : memref<1x18x18x128xf32, #tpu.memory_space<vmem>>, vector<1x8x16x128xf32>
    %23 = vector.shape_cast %22 : vector<1x8x16x128xf32> to vector<8x16x128xf32>
    %24 = vector.extract_strided_slice %1 {offsets = [2, 0], sizes = [1, 128], strides = [1, 1]} : vector<9x128xf32> to vector<1x128xf32>
    %25 = vector.shape_cast %24 : vector<1x128xf32> to vector<128xf32>
    %26 = vector.shape_cast %25 : vector<128xf32> to vector<1x1x128xf32>
    %27 = vector.broadcast %26 : vector<1x1x128xf32> to vector<8x16x128xf32>
    %28 = arith.mulf %23, %27 : vector<8x16x128xf32>
    %29 = arith.addf %19, %28 : vector<8x16x128xf32>
    %c1_i32 = arith.constant 1 : i32
    %30 = arith.addi %0, %c1_i32 : i32
    %c0_9 = arith.constant 0 : index
    %31 = arith.index_cast %30 : i32 to index
    %c0_10 = arith.constant 0 : index
    %c0_11 = arith.constant 0 : index
    %32 = vector.load %arg2[%c0_9, %31, %c0_10, %c0_11] : memref<1x18x18x128xf32, #tpu.memory_space<vmem>>, vector<1x8x16x128xf32>
    %33 = vector.shape_cast %32 : vector<1x8x16x128xf32> to vector<8x16x128xf32>
    %34 = vector.extract_strided_slice %1 {offsets = [3, 0], sizes = [1, 128], strides = [1, 1]} : vector<9x128xf32> to vector<1x128xf32>
    %35 = vector.shape_cast %34 : vector<1x128xf32> to vector<128xf32>
    %36 = vector.shape_cast %35 : vector<128xf32> to vector<1x1x128xf32>
    %37 = vector.broadcast %36 : vector<1x1x128xf32> to vector<8x16x128xf32>
    %38 = arith.mulf %33, %37 : vector<8x16x128xf32>
    %39 = arith.addf %29, %38 : vector<8x16x128xf32>
    %c1_i32_12 = arith.constant 1 : i32
    %40 = arith.addi %0, %c1_i32_12 : i32
    %c0_13 = arith.constant 0 : index
    %41 = arith.index_cast %40 : i32 to index
    %c1_14 = arith.constant 1 : index
    %c0_15 = arith.constant 0 : index
    %42 = vector.load %arg2[%c0_13, %41, %c1_14, %c0_15] : memref<1x18x18x128xf32, #tpu.memory_space<vmem>>, vector<1x8x16x128xf32>
    %43 = vector.shape_cast %42 : vector<1x8x16x128xf32> to vector<8x16x128xf32>
    %44 = vector.extract_strided_slice %1 {offsets = [4, 0], sizes = [1, 128], strides = [1, 1]} : vector<9x128xf32> to vector<1x128xf32>
    %45 = vector.shape_cast %44 : vector<1x128xf32> to vector<128xf32>
    %46 = vector.shape_cast %45 : vector<128xf32> to vector<1x1x128xf32>
    %47 = vector.broadcast %46 : vector<1x1x128xf32> to vector<8x16x128xf32>
    %48 = arith.mulf %43, %47 : vector<8x16x128xf32>
    %49 = arith.addf %39, %48 : vector<8x16x128xf32>
    %c1_i32_16 = arith.constant 1 : i32
    %50 = arith.addi %0, %c1_i32_16 : i32
    %c0_17 = arith.constant 0 : index
    %51 = arith.index_cast %50 : i32 to index
    %c2_18 = arith.constant 2 : index
    %c0_19 = arith.constant 0 : index
    %52 = vector.load %arg2[%c0_17, %51, %c2_18, %c0_19] : memref<1x18x18x128xf32, #tpu.memory_space<vmem>>, vector<1x8x16x128xf32>
    %53 = vector.shape_cast %52 : vector<1x8x16x128xf32> to vector<8x16x128xf32>
    %54 = vector.extract_strided_slice %1 {offsets = [5, 0], sizes = [1, 128], strides = [1, 1]} : vector<9x128xf32> to vector<1x128xf32>
    %55 = vector.shape_cast %54 : vector<1x128xf32> to vector<128xf32>
    %56 = vector.shape_cast %55 : vector<128xf32> to vector<1x1x128xf32>
    %57 = vector.broadcast %56 : vector<1x1x128xf32> to vector<8x16x128xf32>
    %58 = arith.mulf %53, %57 : vector<8x16x128xf32>
    %59 = arith.addf %49, %58 : vector<8x16x128xf32>
    %c2_i32 = arith.constant 2 : i32
    %60 = arith.addi %0, %c2_i32 : i32
    %c0_20 = arith.constant 0 : index
    %61 = arith.index_cast %60 : i32 to index
    %c0_21 = arith.constant 0 : index
    %c0_22 = arith.constant 0 : index
    %62 = vector.load %arg2[%c0_20, %61, %c0_21, %c0_22] : memref<1x18x18x128xf32, #tpu.memory_space<vmem>>, vector<1x8x16x128xf32>
    %63 = vector.shape_cast %62 : vector<1x8x16x128xf32> to vector<8x16x128xf32>
    %64 = vector.extract_strided_slice %1 {offsets = [6, 0], sizes = [1, 128], strides = [1, 1]} : vector<9x128xf32> to vector<1x128xf32>
    %65 = vector.shape_cast %64 : vector<1x128xf32> to vector<128xf32>
    %66 = vector.shape_cast %65 : vector<128xf32> to vector<1x1x128xf32>
    %67 = vector.broadcast %66 : vector<1x1x128xf32> to vector<8x16x128xf32>
    %68 = arith.mulf %63, %67 : vector<8x16x128xf32>
    %69 = arith.addf %59, %68 : vector<8x16x128xf32>
    %c2_i32_23 = arith.constant 2 : i32
    %70 = arith.addi %0, %c2_i32_23 : i32
    %c0_24 = arith.constant 0 : index
    %71 = arith.index_cast %70 : i32 to index
    %c1_25 = arith.constant 1 : index
    %c0_26 = arith.constant 0 : index
    %72 = vector.load %arg2[%c0_24, %71, %c1_25, %c0_26] : memref<1x18x18x128xf32, #tpu.memory_space<vmem>>, vector<1x8x16x128xf32>
    %73 = vector.shape_cast %72 : vector<1x8x16x128xf32> to vector<8x16x128xf32>
    %74 = vector.extract_strided_slice %1 {offsets = [7, 0], sizes = [1, 128], strides = [1, 1]} : vector<9x128xf32> to vector<1x128xf32>
    %75 = vector.shape_cast %74 : vector<1x128xf32> to vector<128xf32>
    %76 = vector.shape_cast %75 : vector<128xf32> to vector<1x1x128xf32>
    %77 = vector.broadcast %76 : vector<1x1x128xf32> to vector<8x16x128xf32>
    %78 = arith.mulf %73, %77 : vector<8x16x128xf32>
    %79 = arith.addf %69, %78 : vector<8x16x128xf32>
    %c2_i32_27 = arith.constant 2 : i32
    %80 = arith.addi %0, %c2_i32_27 : i32
    %c0_28 = arith.constant 0 : index
    %81 = arith.index_cast %80 : i32 to index
    %c2_29 = arith.constant 2 : index
    %c0_30 = arith.constant 0 : index
    %82 = vector.load %arg2[%c0_28, %81, %c2_29, %c0_30] : memref<1x18x18x128xf32, #tpu.memory_space<vmem>>, vector<1x8x16x128xf32>
    %83 = vector.shape_cast %82 : vector<1x8x16x128xf32> to vector<8x16x128xf32>
    %84 = vector.extract_strided_slice %1 {offsets = [8, 0], sizes = [1, 128], strides = [1, 1]} : vector<9x128xf32> to vector<1x128xf32>
    %85 = vector.shape_cast %84 : vector<1x128xf32> to vector<128xf32>
    %86 = vector.shape_cast %85 : vector<128xf32> to vector<1x1x128xf32>
    %87 = vector.broadcast %86 : vector<1x1x128xf32> to vector<8x16x128xf32>
    %88 = arith.mulf %83, %87 : vector<8x16x128xf32>
    %89 = arith.addf %79, %88 : vector<8x16x128xf32>
    %90 = vector.shape_cast %89 : vector<8x16x128xf32> to vector<128x128xf32>
    %91 = arith.truncf %90 : vector<128x128xf32> to vector<128x128xbf16>
    %c0_31 = arith.constant 0 : index
    %c0_32 = arith.constant 0 : index
    %92 = vector.load %arg4[%c0_31, %c0_32] : memref<128x128xbf16, #tpu.memory_space<vmem>>, vector<128x128xbf16>
    %cst = arith.constant dense<0.000000e+00> : vector<128x128xf32>
    %93 = tpu.matmul %91, %92, %cst {dimension_numbers = #tpu.dot_dimension_numbers<[1], [0], [0], [1], [0, 0, 1, 1], [], []>} : vector<128x128xbf16>, vector<128x128xbf16>, vector<128x128xf32> -> vector<128x128xf32>
    %c0_33 = arith.constant 0 : index
    %c0_34 = arith.constant 0 : index
    %94 = vector.load %arg5[%c0_33, %c0_34] : memref<128x128xf32, #tpu.memory_space<vmem>>, vector<128x128xf32>
    tpu.vector_store %arg5[%c0_33, %c0_34], %93 {strides = array<i32>} : memref<128x128xf32, #tpu.memory_space<vmem>>, vector<128x128xf32>,
    %c0_i32_35 = arith.constant 0 : i32
    %95 = arith.cmpi eq, %arg1, %c0_i32_35 : i32
    %96 = arith.extui %95 : i1 to i32
    %c0_i32_36 = arith.constant 0 : i32
    %97 = arith.cmpi ne, %96, %c0_i32_36 : i32
    scf.if %97 {
      %cst_51 = arith.constant 0.000000e+00 : f32
      %109 = vector.broadcast %cst_51 : f32 to vector<1x1x128xf32>
      %c0_52 = arith.constant 0 : index
      %c0_53 = arith.constant 0 : index
      %c0_54 = arith.constant 0 : index
      %110 = vector.load %arg6[%c0_52, %c0_53, %c0_54] : memref<1x1x128xf32, #tpu.memory_space<vmem>>, vector<1x1x128xf32>
      tpu.vector_store %arg6[%c0_52, %c0_53, %c0_54], %109 {strides = array<i32>} : memref<1x1x128xf32, #tpu.memory_space<vmem>>, vector<1x1x128xf32>,
      %cst_55 = arith.constant 0.000000e+00 : f32
      %111 = vector.broadcast %cst_55 : f32 to vector<1x1x128xf32>
      %c0_56 = arith.constant 0 : index
      %c0_57 = arith.constant 0 : index
      %c0_58 = arith.constant 0 : index
      %112 = vector.load %arg7[%c0_56, %c0_57, %c0_58] : memref<1x1x128xf32, #tpu.memory_space<vmem>>, vector<1x1x128xf32>
      tpu.vector_store %arg7[%c0_56, %c0_57, %c0_58], %111 {strides = array<i32>} : memref<1x1x128xf32, #tpu.memory_space<vmem>>, vector<1x1x128xf32>,
    } else {
    }
    %c0_37 = arith.constant 0 : index
    %c0_38 = arith.constant 0 : index
    %c0_39 = arith.constant 0 : index
    %98 = vector.load %arg6[%c0_37, %c0_38, %c0_39] : memref<1x1x128xf32, #tpu.memory_space<vmem>>, vector<1x1x128xf32>
    %cst_40 = arith.constant dense<0.000000e+00> : vector<128xf32>
    %99 = vector.multi_reduction <add>, %93, %cst_40 [0] : vector<128x128xf32> to vector<128xf32>
    %100 = vector.shape_cast %99 : vector<128xf32> to vector<1x1x128xf32>
    %101 = arith.addf %98, %100 : vector<1x1x128xf32>
    %c0_41 = arith.constant 0 : index
    %c0_42 = arith.constant 0 : index
    %c0_43 = arith.constant 0 : index
    %102 = vector.load %arg6[%c0_41, %c0_42, %c0_43] : memref<1x1x128xf32, #tpu.memory_space<vmem>>, vector<1x1x128xf32>
    tpu.vector_store %arg6[%c0_41, %c0_42, %c0_43], %101 {strides = array<i32>} : memref<1x1x128xf32, #tpu.memory_space<vmem>>, vector<1x1x128xf32>,
    %c0_44 = arith.constant 0 : index
    %c0_45 = arith.constant 0 : index
    %c0_46 = arith.constant 0 : index
    %103 = vector.load %arg7[%c0_44, %c0_45, %c0_46] : memref<1x1x128xf32, #tpu.memory_space<vmem>>, vector<1x1x128xf32>
    %104 = arith.mulf %93, %93 : vector<128x128xf32>
    %cst_47 = arith.constant dense<0.000000e+00> : vector<128xf32>
    %105 = vector.multi_reduction <add>, %104, %cst_47 [0] : vector<128x128xf32> to vector<128xf32>
    %106 = vector.shape_cast %105 : vector<128xf32> to vector<1x1x128xf32>
    %107 = arith.addf %103, %106 : vector<1x1x128xf32>
    %c0_48 = arith.constant 0 : index
    %c0_49 = arith.constant 0 : index
    %c0_50 = arith.constant 0 : index
    %108 = vector.load %arg7[%c0_48, %c0_49, %c0_50] : memref<1x1x128xf32, #tpu.memory_space<vmem>>, vector<1x1x128xf32>
    tpu.vector_store %arg7[%c0_48, %c0_49, %c0_50], %107 {strides = array<i32>} : memref<1x1x128xf32, #tpu.memory_space<vmem>>, vector<1x1x128xf32>,
    return
  }
  func.func @transform_0(%arg0: i32, %arg1: i32) -> (i32, i32, i32, i32) {
    %c0_i32 = arith.constant 0 : i32
    %c0_i32_0 = arith.constant 0 : i32
    %c0_i32_1 = arith.constant 0 : i32
    %c0_i32_2 = arith.constant 0 : i32
    return %arg0, %c0_i32, %c0_i32_0, %c0_i32_1 : i32, i32, i32, i32
  }
  func.func @transform_1(%arg0: i32, %arg1: i32) -> (i32, i32) {
    %c0_i32 = arith.constant 0 : i32
    %c0_i32_0 = arith.constant 0 : i32
    %c0_i32_1 = arith.constant 0 : i32
    return %c0_i32, %c0_i32_0 : i32, i32
  }
  func.func @transform_2(%arg0: i32, %arg1: i32) -> (i32, i32) {
    %c0_i32 = arith.constant 0 : i32
    %c0_i32_0 = arith.constant 0 : i32
    %c0_i32_1 = arith.constant 0 : i32
    return %c0_i32, %c0_i32_0 : i32, i32
  }
  func.func @transform_3(%arg0: i32, %arg1: i32) -> (i32, i32) {
    %c2_i32 = arith.constant 2 : i32
    %0 = arith.muli %arg0, %c2_i32 : i32
    %1 = arith.addi %0, %arg1 : i32
    %c0_i32 = arith.constant 0 : i32
    %c0_i32_0 = arith.constant 0 : i32
    return %1, %c0_i32 : i32, i32
  }
  func.func @transform_4(%arg0: i32, %arg1: i32) -> (i32, i32, i32) {
    %c0_i32 = arith.constant 0 : i32
    %c0_i32_0 = arith.constant 0 : i32
    %c0_i32_1 = arith.constant 0 : i32
    return %arg0, %c0_i32, %c0_i32_0 : i32, i32, i32
  }
  func.func @transform_5(%arg0: i32, %arg1: i32) -> (i32, i32, i32) {
    %c0_i32 = arith.constant 0 : i32
    %c0_i32_0 = arith.constant 0 : i32
    %c0_i32_1 = arith.constant 0 : i32
    return %arg0, %c0_i32, %c0_i32_0 : i32, i32, i32
  }
}

module attributes {stable_mosaic.version = 11 : i64} {
  func.func @_bn_hswish_kernel(%arg0: i32, %arg1: memref<512x128xf32, #tpu.memory_space<vmem>>, %arg2: memref<1x128xf32, #tpu.memory_space<vmem>>, %arg3: memref<1x128xf32, #tpu.memory_space<vmem>>, %arg4: memref<512x128xf32, #tpu.memory_space<vmem>>) attributes {dimension_semantics = [#tpu.dimension_semantics<parallel>], iteration_bounds = array<i64: 1>, scalar_prefetch = 0 : i64, scratch_operands = 0 : i64, tpu.core_type = #tpu.core_type<tc>, window_params = [{transform_indices = @transform_0, window_bounds = array<i64: 512, 128>}, {pipeline_mode = #tpu.pipeline_mode<synchronous>, transform_indices = @transform_1, window_bounds = array<i64: 1, 128>}, {pipeline_mode = #tpu.pipeline_mode<synchronous>, transform_indices = @transform_2, window_bounds = array<i64: 1, 128>}, {transform_indices = @transform_3, window_bounds = array<i64: 512, 128>}]} {
    %c0 = arith.constant 0 : index
    %c0_0 = arith.constant 0 : index
    %0 = vector.load %arg1[%c0, %c0_0] : memref<512x128xf32, #tpu.memory_space<vmem>>, vector<512x128xf32>
    %c0_1 = arith.constant 0 : index
    %c0_2 = arith.constant 0 : index
    %1 = vector.load %arg2[%c0_1, %c0_2] : memref<1x128xf32, #tpu.memory_space<vmem>>, vector<1x128xf32>
    %2 = vector.broadcast %1 : vector<1x128xf32> to vector<512x128xf32>
    %3 = arith.mulf %0, %2 : vector<512x128xf32>
    %c0_3 = arith.constant 0 : index
    %c0_4 = arith.constant 0 : index
    %4 = vector.load %arg3[%c0_3, %c0_4] : memref<1x128xf32, #tpu.memory_space<vmem>>, vector<1x128xf32>
    %5 = vector.broadcast %4 : vector<1x128xf32> to vector<512x128xf32>
    %6 = arith.addf %3, %5 : vector<512x128xf32>
    %cst = arith.constant 3.000000e+00 : f32
    %7 = vector.broadcast %cst : f32 to vector<512x128xf32>
    %8 = arith.addf %6, %7 : vector<512x128xf32>
    %cst_5 = arith.constant 0.000000e+00 : f32
    %cst_6 = arith.constant 6.000000e+00 : f32
    %9 = vector.broadcast %cst_5 : f32 to vector<512x128xf32>
    %10 = arith.maximumf %9, %8 : vector<512x128xf32>
    %11 = vector.broadcast %cst_6 : f32 to vector<512x128xf32>
    %12 = arith.minimumf %11, %10 : vector<512x128xf32>
    %13 = arith.mulf %6, %12 : vector<512x128xf32>
    %cst_7 = arith.constant 0.166666672 : f32
    %14 = vector.broadcast %cst_7 : f32 to vector<512x128xf32>
    %15 = arith.mulf %13, %14 : vector<512x128xf32>
    %c0_8 = arith.constant 0 : index
    %c0_9 = arith.constant 0 : index
    %16 = vector.load %arg4[%c0_8, %c0_9] : memref<512x128xf32, #tpu.memory_space<vmem>>, vector<512x128xf32>
    tpu.vector_store %arg4[%c0_8, %c0_9], %15 {strides = array<i32>} : memref<512x128xf32, #tpu.memory_space<vmem>>, vector<512x128xf32>,
    return
  }
  func.func @transform_0(%arg0: i32) -> (i32, i32) {
    %c0_i32 = arith.constant 0 : i32
    %c0_i32_0 = arith.constant 0 : i32
    return %arg0, %c0_i32 : i32, i32
  }
  func.func @transform_1(%arg0: i32) -> (i32, i32) {
    %c0_i32 = arith.constant 0 : i32
    %c0_i32_0 = arith.constant 0 : i32
    %c0_i32_1 = arith.constant 0 : i32
    return %c0_i32, %c0_i32_0 : i32, i32
  }
  func.func @transform_2(%arg0: i32) -> (i32, i32) {
    %c0_i32 = arith.constant 0 : i32
    %c0_i32_0 = arith.constant 0 : i32
    %c0_i32_1 = arith.constant 0 : i32
    return %c0_i32, %c0_i32_0 : i32, i32
  }
  func.func @transform_3(%arg0: i32) -> (i32, i32) {
    %c0_i32 = arith.constant 0 : i32
    %c0_i32_0 = arith.constant 0 : i32
    return %arg0, %c0_i32 : i32, i32
  }
}

</mosaic_0001>

<llo_original>
// kernel: dwconv2d_bn.3
$region0: #{dwconv2d_bn.3}
  #allocation0 [shape = 'u32[]', space=smem, size = 0x4, offset = 0x4, fixed_abs, tag = 'smem constant byte address 0x4 - core index']
  #allocation1 [shape = 'u32[72,128]{1,0:T(1,128)}', space=vmem, size = 0x9000, scoped, tag = 'internal scratch']
  %s0 = inlined_call_operand.vmem [shape: f32[512,128], index: 0, kind: input, shape index: {}]
  %s1 = inlined_call_operand.vmem [shape: f32[1,128], index: 1, kind: input, shape index: {}]
  %s2 = inlined_call_operand.vmem [shape: f32[1,128], index: 2, kind: input, shape index: {}]
  %s3 = inlined_call_operand.vmem [shape: f32[512,128], index: 3, kind: output, shape index: {}]
  %s4 = sld [smem:[#allocation0]]
  $region22: #{dwconv2d_bn.3} parent=0
    _
  %s6 = ssub.s32 1, %s4
  %s7 = scalar_select 0, %s6, %s4
  // Predicated region
  $region2: #{dwconv2d_bn.3} parent=0 // pred_check
    _
  $region3: #{dwconv2d_bn.3} parent=0 // pred_check_branch
    %9 = sbr.rel (0) target = $region5
  $region4: #{dwconv2d_bn.3} parent=0 // pred_region
    _
  $region5: #{dwconv2d_bn.3} parent=0 // pred_fallthru
    _
  // Predicated region
  $region6: #{dwconv2d_bn.3} parent=0 // pred_check
    _
  $region7: #{dwconv2d_bn.3} parent=0 // pred_check_branch
    %11 = sbr.rel (0) target = $region9
  $region8: #{dwconv2d_bn.3} parent=0 // pred_region
    _
  $region9: #{dwconv2d_bn.3} parent=0 // pred_fallthru
    _
  // Predicated region
  $region10: #{dwconv2d_bn.3} parent=0 // pred_check
    _
  $region11: #{dwconv2d_bn.3} parent=0 // pred_check_branch
    %13 = sbr.rel (0) target = $region13
  $region12: #{dwconv2d_bn.3} parent=0 // pred_region
    _
  $region13: #{dwconv2d_bn.3} parent=0 // pred_fallthru
    _
  %v14 = vld [vmem:[%s0] sm:$0xff]
  %v15 = vld [vmem:[%s0 + $0x8] sm:$0xff]
  %v16 = vld [vmem:[%s0 + $0x10] sm:$0xff]
  %v17 = vld [vmem:[%s0 + $0x18] sm:$0xff]
  %v18 = vld [vmem:[%s0 + $0x20] sm:$0xff]
  %v19 = vld [vmem:[%s0 + $0x28] sm:$0xff]
  %v20 = vld [vmem:[%s0 + $0x30] sm:$0xff]
  %v21 = vld [vmem:[%s0 + $0x38] sm:$0xff]
  %v22 = vld [vmem:[%s0 + $0x40] sm:$0xff]
  %v23 = vld [vmem:[%s0 + $0x48] sm:$0xff]
  %v24 = vld [vmem:[%s0 + $0x50] sm:$0xff]
  %v25 = vld [vmem:[%s0 + $0x58] sm:$0xff]
  %v26 = vld [vmem:[%s0 + $0x60] sm:$0xff]
  %v27 = vld [vmem:[%s0 + $0x68] sm:$0xff]
  %v28 = vld [vmem:[%s0 + $0x70] sm:$0xff]
  %v29 = vld [vmem:[%s0 + $0x78] sm:$0xff]
  %v30 = vld [vmem:[%s0 + $0x80] sm:$0xff]
  %v31 = vld [vmem:[%s0 + $0x88] sm:$0xff]
  %v32 = vld [vmem:[%s0 + $0x90] sm:$0xff]
  %v33 = vld [vmem:[%s0 + $0x98] sm:$0xff]
  %v34 = vld [vmem:[%s0 + $0xa0] sm:$0xff]
  %v35 = vld [vmem:[%s0 + $0xa8] sm:$0xff]
  %v36 = vld [vmem:[%s0 + $0xb0] sm:$0xff]
  %v37 = vld [vmem:[%s0 + $0xb8] sm:$0xff]
  %v38 = vld [vmem:[%s0 + $0xc0] sm:$0xff]
  %v39 = vld [vmem:[%s0 + $0xc8] sm:$0xff]
  %v40 = vld [vmem:[%s0 + $0xd0] sm:$0xff]
  %v41 = vld [vmem:[%s0 + $0xd8] sm:$0xff]
  %v42 = vld [vmem:[%s0 + $0xe0] sm:$0xff]
  %v43 = vld [vmem:[%s0 + $0xe8] sm:$0xff]
  %v44 = vld [vmem:[%s0 + $0xf0] sm:$0xff]
  %v45 = vld [vmem:[%s0 + $0xf8] sm:$0xff]
  %v46 = vld [vmem:[%s0 + $0x100] sm:$0xff]
  %v47 = vld [vmem:[%s0 + $0x108] sm:$0xff]
  %v48 = vld [vmem:[%s0 + $0x110] sm:$0xff]
  %v49 = vld [vmem:[%s0 + $0x118] sm:$0xff]
  %v50 = vld [vmem:[%s0 + $0x120] sm:$0xff]
  %v51 = vld [vmem:[%s0 + $0x128] sm:$0xff]
  %v52 = vld [vmem:[%s0 + $0x130] sm:$0xff]
  %v53 = vld [vmem:[%s0 + $0x138] sm:$0xff]
  %v54 = vld [vmem:[%s0 + $0x140] sm:$0xff]
  %v55 = vld [vmem:[%s0 + $0x148] sm:$0xff]
  %v56 = vld [vmem:[%s0 + $0x150] sm:$0xff]
  %v57 = vld [vmem:[%s0 + $0x158] sm:$0xff]
  %v58 = vld [vmem:[%s0 + $0x160] sm:$0xff]
  %v59 = vld [vmem:[%s0 + $0x168] sm:$0xff]
  %v60 = vld [vmem:[%s0 + $0x170] sm:$0xff]
  %v61 = vld [vmem:[%s0 + $0x178] sm:$0xff]
  %v62 = vld [vmem:[%s0 + $0x180] sm:$0xff]
  %v63 = vld [vmem:[%s0 + $0x188] sm:$0xff]
  %v64 = vld [vmem:[%s0 + $0x190] sm:$0xff]
  %v65 = vld [vmem:[%s0 + $0x198] sm:$0xff]
  %v66 = vld [vmem:[%s0 + $0x1a0] sm:$0xff]
  %v67 = vld [vmem:[%s0 + $0x1a8] sm:$0xff]
  %v68 = vld [vmem:[%s0 + $0x1b0] sm:$0xff]
  %v69 = vld [vmem:[%s0 + $0x1b8] sm:$0xff]
  %v70 = vld [vmem:[%s0 + $0x1c0] sm:$0xff]
  %v71 = vld [vmem:[%s0 + $0x1c8] sm:$0xff]
  %v72 = vld [vmem:[%s0 + $0x1d0] sm:$0xff]
  %v73 = vld [vmem:[%s0 + $0x1d8] sm:$0xff]
  %v74 = vld [vmem:[%s0 + $0x1e0] sm:$0xff]
  %v75 = vld [vmem:[%s0 + $0x1e8] sm:$0xff]
  %v76 = vld [vmem:[%s0 + $0x1f0] sm:$0xff]
  %v77 = vld [vmem:[%s0 + $0x1f8] sm:$0xff]
  %v78 = vld [vmem:[%s1] sm:$0x1]
  %v80 = vperm.slane %v78, 0
  %v82 = vmul.f32 %v14, %v80
  %v83 = vmul.f32 %v15, %v80
  %v84 = vmul.f32 %v16, %v80
  %v85 = vmul.f32 %v17, %v80
  %v86 = vmul.f32 %v18, %v80
  %v87 = vmul.f32 %v19, %v80
  %v88 = vmul.f32 %v20, %v80
  %v89 = vmul.f32 %v21, %v80
  %v90 = vmul.f32 %v22, %v80
  %v91 = vmul.f32 %v23, %v80
  %v92 = vmul.f32 %v24, %v80
  %v93 = vmul.f32 %v25, %v80
  %v94 = vmul.f32 %v26, %v80
  %v95 = vmul.f32 %v27, %v80
  %v96 = vmul.f32 %v28, %v80
  %v97 = vmul.f32 %v29, %v80
  %v98 = vmul.f32 %v30, %v80
  %v99 = vmul.f32 %v31, %v80
  %v100 = vmul.f32 %v32, %v80
  %v101 = vmul.f32 %v33, %v80
  %v102 = vmul.f32 %v34, %v80
  %v103 = vmul.f32 %v35, %v80
  %v104 = vmul.f32 %v36, %v80
  %v105 = vmul.f32 %v37, %v80
  %v106 = vmul.f32 %v38, %v80
  %v107 = vmul.f32 %v39, %v80
  %v108 = vmul.f32 %v40, %v80
  %v109 = vmul.f32 %v41, %v80
  %v110 = vmul.f32 %v42, %v80
  %v111 = vmul.f32 %v43, %v80
  %v112 = vmul.f32 %v44, %v80
  %v113 = vmul.f32 %v45, %v80
  %v114 = vmul.f32 %v46, %v80
  %v115 = vmul.f32 %v47, %v80
  %v116 = vmul.f32 %v48, %v80
  %v117 = vmul.f32 %v49, %v80
  %v118 = vmul.f32 %v50, %v80
  %v119 = vmul.f32 %v51, %v80
  %v120 = vmul.f32 %v52, %v80
  %v121 = vmul.f32 %v53, %v80
  %v122 = vmul.f32 %v54, %v80
  %v123 = vmul.f32 %v55, %v80
  %v124 = vmul.f32 %v56, %v80
  %v125 = vmul.f32 %v57, %v80
  %v126 = vmul.f32 %v58, %v80
  %v127 = vmul.f32 %v59, %v80
  %v128 = vmul.f32 %v60, %v80
  %v129 = vmul.f32 %v61, %v80
  %v130 = vmul.f32 %v62, %v80
  %v131 = vmul.f32 %v63, %v80
  %v132 = vmul.f32 %v64, %v80
  %v133 = vmul.f32 %v65, %v80
  %v134 = vmul.f32 %v66, %v80
  %v135 = vmul.f32 %v67, %v80
  %v136 = vmul.f32 %v68, %v80
  %v137 = vmul.f32 %v69, %v80
  %v138 = vmul.f32 %v70, %v80
  %v139 = vmul.f32 %v71, %v80
  %v140 = vmul.f32 %v72, %v80
  %v141 = vmul.f32 %v73, %v80
  %v142 = vmul.f32 %v74, %v80
  %v143 = vmul.f32 %v75, %v80
  %v144 = vmul.f32 %v76, %v80
  %v145 = vmul.f32 %v77, %v80
  %v146 = vld [vmem:[%s2] sm:$0x1]
  %v148 = vperm.slane %v146, 0
  %v150 = vadd.f32 %v82, %v148
  %v151 = vadd.f32 %v83, %v148
  %v152 = vadd.f32 %v84, %v148
  %v153 = vadd.f32 %v85, %v148
  %v154 = vadd.f32 %v86, %v148
  %v155 = vadd.f32 %v87, %v148
  %v156 = vadd.f32 %v88, %v148
  %v157 = vadd.f32 %v89, %v148
  %v158 = vadd.f32 %v90, %v148
  %v159 = vadd.f32 %v91, %v148
  %v160 = vadd.f32 %v92, %v148
  %v161 = vadd.f32 %v93, %v148
  %v162 = vadd.f32 %v94, %v148
  %v163 = vadd.f32 %v95, %v148
  %v164 = vadd.f32 %v96, %v148
  %v165 = vadd.f32 %v97, %v148
  %v166 = vadd.f32 %v98, %v148
  %v167 = vadd.f32 %v99, %v148
  %v168 = vadd.f32 %v100, %v148
  %v169 = vadd.f32 %v101, %v148
  %v170 = vadd.f32 %v102, %v148
  %v171 = vadd.f32 %v103, %v148
  %v172 = vadd.f32 %v104, %v148
  %v173 = vadd.f32 %v105, %v148
  %v174 = vadd.f32 %v106, %v148
  %v175 = vadd.f32 %v107, %v148
  %v176 = vadd.f32 %v108, %v148
  %v177 = vadd.f32 %v109, %v148
  %v178 = vadd.f32 %v110, %v148
  %v179 = vadd.f32 %v111, %v148
  %v180 = vadd.f32 %v112, %v148
  %v181 = vadd.f32 %v113, %v148
  %v182 = vadd.f32 %v114, %v148
  %v183 = vadd.f32 %v115, %v148
  %v184 = vadd.f32 %v116, %v148
  %v185 = vadd.f32 %v117, %v148
  %v186 = vadd.f32 %v118, %v148
  %v187 = vadd.f32 %v119, %v148
  %v188 = vadd.f32 %v120, %v148
  %v189 = vadd.f32 %v121, %v148
  %v190 = vadd.f32 %v122, %v148
  %v191 = vadd.f32 %v123, %v148
  %v192 = vadd.f32 %v124, %v148
  %v193 = vadd.f32 %v125, %v148
  %v194 = vadd.f32 %v126, %v148
  %v195 = vadd.f32 %v127, %v148
  %v196 = vadd.f32 %v128, %v148
  %v197 = vadd.f32 %v129, %v148
  %v198 = vadd.f32 %v130, %v148
  %v199 = vadd.f32 %v131, %v148
  %v200 = vadd.f32 %v132, %v148
  %v201 = vadd.f32 %v133, %v148
  %v202 = vadd.f32 %v134, %v148
  %v203 = vadd.f32 %v135, %v148
  %v204 = vadd.f32 %v136, %v148
  %v205 = vadd.f32 %v137, %v148
  %v206 = vadd.f32 %v138, %v148
  %v207 = vadd.f32 %v139, %v148
  %v208 = vadd.f32 %v140, %v148
  %v209 = vadd.f32 %v141, %v148
  %v210 = vadd.f32 %v142, %v148
  %v211 = vadd.f32 %v143, %v148
  %v212 = vadd.f32 %v144, %v148
  %v213 = vadd.f32 %v145, %v148
  %v214 = vadd.f32 %v150, 3.0
  %v215 = vadd.f32 %v151, 3.0
  %v216 = vadd.f32 %v152, 3.0
  %v217 = vadd.f32 %v153, 3.0
  %v218 = vadd.f32 %v154, 3.0
  %v219 = vadd.f32 %v155, 3.0
  %v220 = vadd.f32 %v156, 3.0
  %v221 = vadd.f32 %v157, 3.0
  %v222 = vadd.f32 %v158, 3.0
  %v223 = vadd.f32 %v159, 3.0
  %v224 = vadd.f32 %v160, 3.0
  %v225 = vadd.f32 %v161, 3.0
  %v226 = vadd.f32 %v162, 3.0
  %v227 = vadd.f32 %v163, 3.0
  %v228 = vadd.f32 %v164, 3.0
  %v229 = vadd.f32 %v165, 3.0
  %v230 = vadd.f32 %v166, 3.0
  %v231 = vadd.f32 %v167, 3.0
  %v232 = vadd.f32 %v168, 3.0
  %v233 = vadd.f32 %v169, 3.0
  %v234 = vadd.f32 %v170, 3.0
  %v235 = vadd.f32 %v171, 3.0
  %v236 = vadd.f32 %v172, 3.0
  %v237 = vadd.f32 %v173, 3.0
  %v238 = vadd.f32 %v174, 3.0
  %v239 = vadd.f32 %v175, 3.0
  %v240 = vadd.f32 %v176, 3.0
  %v241 = vadd.f32 %v177, 3.0
  %v242 = vadd.f32 %v178, 3.0
  %v243 = vadd.f32 %v179, 3.0
  %v244 = vadd.f32 %v180, 3.0
  %v245 = vadd.f32 %v181, 3.0
  %v246 = vadd.f32 %v182, 3.0
  %v247 = vadd.f32 %v183, 3.0
  %v248 = vadd.f32 %v184, 3.0
  %v249 = vadd.f32 %v185, 3.0
  %v250 = vadd.f32 %v186, 3.0
  %v251 = vadd.f32 %v187, 3.0
  %v252 = vadd.f32 %v188, 3.0
  %v253 = vadd.f32 %v189, 3.0
  %v254 = vadd.f32 %v190, 3.0
  %v255 = vadd.f32 %v191, 3.0
  %v256 = vadd.f32 %v192, 3.0
  %v257 = vadd.f32 %v193, 3.0
  %v258 = vadd.f32 %v194, 3.0
  %v259 = vadd.f32 %v195, 3.0
  %v260 = vadd.f32 %v196, 3.0
  %v261 = vadd.f32 %v197, 3.0
  %v262 = vadd.f32 %v198, 3.0
  %v263 = vadd.f32 %v199, 3.0
  %v264 = vadd.f32 %v200, 3.0
  %v265 = vadd.f32 %v201, 3.0
  %v266 = vadd.f32 %v202, 3.0
  %v267 = vadd.f32 %v203, 3.0
  %v268 = vadd.f32 %v204, 3.0
  %v269 = vadd.f32 %v205, 3.0
  %v270 = vadd.f32 %v206, 3.0
  %v271 = vadd.f32 %v207, 3.0
  %v272 = vadd.f32 %v208, 3.0
  %v273 = vadd.f32 %v209, 3.0
  %v274 = vadd.f32 %v210, 3.0
  %v275 = vadd.f32 %v211, 3.0
  %v276 = vadd.f32 %v212, 3.0
  %v277 = vadd.f32 %v213, 3.0
  %v278 = vmax.f32 %v214, 0.0
  %v279 = vmax.f32 %v215, 0.0
  %v280 = vmax.f32 %v216, 0.0
  %v281 = vmax.f32 %v217, 0.0
  %v282 = vmax.f32 %v218, 0.0
  %v283 = vmax.f32 %v219, 0.0
  %v284 = vmax.f32 %v220, 0.0
  %v285 = vmax.f32 %v221, 0.0
  %v286 = vmax.f32 %v222, 0.0
  %v287 = vmax.f32 %v223, 0.0
  %v288 = vmax.f32 %v224, 0.0
  %v289 = vmax.f32 %v225, 0.0
  %v290 = vmax.f32 %v226, 0.0
  %v291 = vmax.f32 %v227, 0.0
  %v292 = vmax.f32 %v228, 0.0
  %v293 = vmax.f32 %v229, 0.0
  %v294 = vmax.f32 %v230, 0.0
  %v295 = vmax.f32 %v231, 0.0
  %v296 = vmax.f32 %v232, 0.0
  %v297 = vmax.f32 %v233, 0.0
  %v298 = vmax.f32 %v234, 0.0
  %v299 = vmax.f32 %v235, 0.0
  %v300 = vmax.f32 %v236, 0.0
  %v301 = vmax.f32 %v237, 0.0
  %v302 = vmax.f32 %v238, 0.0
  %v303 = vmax.f32 %v239, 0.0
  %v304 = vmax.f32 %v240, 0.0
  %v305 = vmax.f32 %v241, 0.0
  %v306 = vmax.f32 %v242, 0.0
  %v307 = vmax.f32 %v243, 0.0
  %v308 = vmax.f32 %v244, 0.0
  %v309 = vmax.f32 %v245, 0.0
  %v310 = vmax.f32 %v246, 0.0
  %v311 = vmax.f32 %v247, 0.0
  %v312 = vmax.f32 %v248, 0.0
  %v313 = vmax.f32 %v249, 0.0
  %v314 = vmax.f32 %v250, 0.0
  %v315 = vmax.f32 %v251, 0.0
  %v316 = vmax.f32 %v252, 0.0
  %v317 = vmax.f32 %v253, 0.0
  %v318 = vmax.f32 %v254, 0.0
  %v319 = vmax.f32 %v255, 0.0
  %v320 = vmax.f32 %v256, 0.0
  %v321 = vmax.f32 %v257, 0.0
  %v322 = vmax.f32 %v258, 0.0
  %v323 = vmax.f32 %v259, 0.0
  %v324 = vmax.f32 %v260, 0.0
  %v325 = vmax.f32 %v261, 0.0
  %v326 = vmax.f32 %v262, 0.0
  %v327 = vmax.f32 %v263, 0.0
  %v328 = vmax.f32 %v264, 0.0
  %v329 = vmax.f32 %v265, 0.0
  %v330 = vmax.f32 %v266, 0.0
  %v331 = vmax.f32 %v267, 0.0
  %v332 = vmax.f32 %v268, 0.0
  %v333 = vmax.f32 %v269, 0.0
  %v334 = vmax.f32 %v270, 0.0
  %v335 = vmax.f32 %v271, 0.0
  %v336 = vmax.f32 %v272, 0.0
  %v337 = vmax.f32 %v273, 0.0
  %v338 = vmax.f32 %v274, 0.0
  %v339 = vmax.f32 %v275, 0.0
  %v340 = vmax.f32 %v276, 0.0
  %v341 = vmax.f32 %v277, 0.0
  %v342 = vmin.f32 %v278, 6.0
  %v343 = vmin.f32 %v279, 6.0
  %v344 = vmin.f32 %v280, 6.0
  %v345 = vmin.f32 %v281, 6.0
  %v346 = vmin.f32 %v282, 6.0
  %v347 = vmin.f32 %v283, 6.0
  %v348 = vmin.f32 %v284, 6.0
  %v349 = vmin.f32 %v285, 6.0
  %v350 = vmin.f32 %v286, 6.0
  %v351 = vmin.f32 %v287, 6.0
  %v352 = vmin.f32 %v288, 6.0
  %v353 = vmin.f32 %v289, 6.0
  %v354 = vmin.f32 %v290, 6.0
  %v355 = vmin.f32 %v291, 6.0
  %v356 = vmin.f32 %v292, 6.0
  %v357 = vmin.f32 %v293, 6.0
  %v358 = vmin.f32 %v294, 6.0
  %v359 = vmin.f32 %v295, 6.0
  %v360 = vmin.f32 %v296, 6.0
  %v361 = vmin.f32 %v297, 6.0
  %v362 = vmin.f32 %v298, 6.0
  %v363 = vmin.f32 %v299, 6.0
  %v364 = vmin.f32 %v300, 6.0
  %v365 = vmin.f32 %v301, 6.0
  %v366 = vmin.f32 %v302, 6.0
  %v367 = vmin.f32 %v303, 6.0
  %v368 = vmin.f32 %v304, 6.0
  %v369 = vmin.f32 %v305, 6.0
  %v370 = vmin.f32 %v306, 6.0
  %v371 = vmin.f32 %v307, 6.0
  %v372 = vmin.f32 %v308, 6.0
  %v373 = vmin.f32 %v309, 6.0
  %v374 = vmin.f32 %v310, 6.0
  %v375 = vmin.f32 %v311, 6.0
  %v376 = vmin.f32 %v312, 6.0
  %v377 = vmin.f32 %v313, 6.0
  %v378 = vmin.f32 %v314, 6.0
  %v379 = vmin.f32 %v315, 6.0
  %v380 = vmin.f32 %v316, 6.0
  %v381 = vmin.f32 %v317, 6.0
  %v382 = vmin.f32 %v318, 6.0
  %v383 = vmin.f32 %v319, 6.0
  %v384 = vmin.f32 %v320, 6.0
  %v385 = vmin.f32 %v321, 6.0
  %v386 = vmin.f32 %v322, 6.0
  %v387 = vmin.f32 %v323, 6.0
  %v388 = vmin.f32 %v324, 6.0
  %v389 = vmin.f32 %v325, 6.0
  %v390 = vmin.f32 %v326, 6.0
  %v391 = vmin.f32 %v327, 6.0
  %v392 = vmin.f32 %v328, 6.0
  %v393 = vmin.f32 %v329, 6.0
  %v394 = vmin.f32 %v330, 6.0
  %v395 = vmin.f32 %v331, 6.0
  %v396 = vmin.f32 %v332, 6.0
  %v397 = vmin.f32 %v333, 6.0
  %v398 = vmin.f32 %v334, 6.0
  %v399 = vmin.f32 %v335, 6.0
  %v400 = vmin.f32 %v336, 6.0
  %v401 = vmin.f32 %v337, 6.0
  %v402 = vmin.f32 %v338, 6.0
  %v403 = vmin.f32 %v339, 6.0
  %v404 = vmin.f32 %v340, 6.0
  %v405 = vmin.f32 %v341, 6.0
  %v406 = vmul.f32 %v150, %v342
  %v407 = vmul.f32 %v151, %v343
  %v408 = vmul.f32 %v152, %v344
  %v409 = vmul.f32 %v153, %v345
  %v410 = vmul.f32 %v154, %v346
  %v411 = vmul.f32 %v155, %v347
  %v412 = vmul.f32 %v156, %v348
  %v413 = vmul.f32 %v157, %v349
  %v414 = vmul.f32 %v158, %v350
  %v415 = vmul.f32 %v159, %v351
  %v416 = vmul.f32 %v160, %v352
  %v417 = vmul.f32 %v161, %v353
  %v418 = vmul.f32 %v162, %v354
  %v419 = vmul.f32 %v163, %v355
  %v420 = vmul.f32 %v164, %v356
  %v421 = vmul.f32 %v165, %v357
  %v422 = vmul.f32 %v166, %v358
  %v423 = vmul.f32 %v167, %v359
  %v424 = vmul.f32 %v168, %v360
  %v425 = vmul.f32 %v169, %v361
  %v426 = vmul.f32 %v170, %v362
  %v427 = vmul.f32 %v171, %v363
  %v428 = vmul.f32 %v172, %v364
  %v429 = vmul.f32 %v173, %v365
  %v430 = vmul.f32 %v174, %v366
  %v431 = vmul.f32 %v175, %v367
  %v432 = vmul.f32 %v176, %v368
  %v433 = vmul.f32 %v177, %v369
  %v434 = vmul.f32 %v178, %v370
  %v435 = vmul.f32 %v179, %v371
  %v436 = vmul.f32 %v180, %v372
  %v437 = vmul.f32 %v181, %v373
  %v438 = vmul.f32 %v182, %v374
  %v439 = vmul.f32 %v183, %v375
  %v440 = vmul.f32 %v184, %v376
  %v441 = vmul.f32 %v185, %v377
  %v442 = vmul.f32 %v186, %v378
  %v443 = vmul.f32 %v187, %v379
  %v444 = vmul.f32 %v188, %v380
  %v445 = vmul.f32 %v189, %v381
  %v446 = vmul.f32 %v190, %v382
  %v447 = vmul.f32 %v191, %v383
  %v448 = vmul.f32 %v192, %v384
  %v449 = vmul.f32 %v193, %v385
  %v450 = vmul.f32 %v194, %v386
  %v451 = vmul.f32 %v195, %v387
  %v452 = vmul.f32 %v196, %v388
  %v453 = vmul.f32 %v197, %v389
  %v454 = vmul.f32 %v198, %v390
  %v455 = vmul.f32 %v199, %v391
  %v456 = vmul.f32 %v200, %v392
  %v457 = vmul.f32 %v201, %v393
  %v458 = vmul.f32 %v202, %v394
  %v459 = vmul.f32 %v203, %v395
  %v460 = vmul.f32 %v204, %v396
  %v461 = vmul.f32 %v205, %v397
  %v462 = vmul.f32 %v206, %v398
  %v463 = vmul.f32 %v207, %v399
  %v464 = vmul.f32 %v208, %v400
  %v465 = vmul.f32 %v209, %v401
  %v466 = vmul.f32 %v210, %v402
  %v467 = vmul.f32 %v211, %v403
  %v468 = vmul.f32 %v212, %v404
  %v469 = vmul.f32 %v213, %v405
  %v470 = vmul.f32 %v406, 0.16666667
  %v471 = vmul.f32 %v407, 0.16666667
  %v472 = vmul.f32 %v408, 0.16666667
  %v473 = vmul.f32 %v409, 0.16666667
  %v474 = vmul.f32 %v410, 0.16666667
  %v475 = vmul.f32 %v411, 0.16666667
  %v476 = vmul.f32 %v412, 0.16666667
  %v477 = vmul.f32 %v413, 0.16666667
  %v478 = vmul.f32 %v414, 0.16666667
  %v479 = vmul.f32 %v415, 0.16666667
  %v480 = vmul.f32 %v416, 0.16666667
  %v481 = vmul.f32 %v417, 0.16666667
  %v482 = vmul.f32 %v418, 0.16666667
  %v483 = vmul.f32 %v419, 0.16666667
  %v484 = vmul.f32 %v420, 0.16666667
  %v485 = vmul.f32 %v421, 0.16666667
  %v486 = vmul.f32 %v422, 0.16666667
  %v487 = vmul.f32 %v423, 0.16666667
  %v488 = vmul.f32 %v424, 0.16666667
  %v489 = vmul.f32 %v425, 0.16666667
  %v490 = vmul.f32 %v426, 0.16666667
  %v491 = vmul.f32 %v427, 0.16666667
  %v492 = vmul.f32 %v428, 0.16666667
  %v493 = vmul.f32 %v429, 0.16666667
  %v494 = vmul.f32 %v430, 0.16666667
  %v495 = vmul.f32 %v431, 0.16666667
  %v496 = vmul.f32 %v432, 0.16666667
  %v497 = vmul.f32 %v433, 0.16666667
  %v498 = vmul.f32 %v434, 0.16666667
  %v499 = vmul.f32 %v435, 0.16666667
  %v500 = vmul.f32 %v436, 0.16666667
  %v501 = vmul.f32 %v437, 0.16666667
  %v502 = vmul.f32 %v438, 0.16666667
  %v503 = vmul.f32 %v439, 0.16666667
  %v504 = vmul.f32 %v440, 0.16666667
  %v505 = vmul.f32 %v441, 0.16666667
  %v506 = vmul.f32 %v442, 0.16666667
  %v507 = vmul.f32 %v443, 0.16666667
  %v508 = vmul.f32 %v444, 0.16666667
  %v509 = vmul.f32 %v445, 0.16666667
  %v510 = vmul.f32 %v446, 0.16666667
  %v511 = vmul.f32 %v447, 0.16666667
  %v512 = vmul.f32 %v448, 0.16666667
  %v513 = vmul.f32 %v449, 0.16666667
  %v514 = vmul.f32 %v450, 0.16666667
  %v515 = vmul.f32 %v451, 0.16666667
  %v516 = vmul.f32 %v452, 0.16666667
  %v517 = vmul.f32 %v453, 0.16666667
  %v518 = vmul.f32 %v454, 0.16666667
  %v519 = vmul.f32 %v455, 0.16666667
  %v520 = vmul.f32 %v456, 0.16666667
  %v521 = vmul.f32 %v457, 0.16666667
  %v522 = vmul.f32 %v458, 0.16666667
  %v523 = vmul.f32 %v459, 0.16666667
  %v524 = vmul.f32 %v460, 0.16666667
  %v525 = vmul.f32 %v461, 0.16666667
  %v526 = vmul.f32 %v462, 0.16666667
  %v527 = vmul.f32 %v463, 0.16666667
  %v528 = vmul.f32 %v464, 0.16666667
  %v529 = vmul.f32 %v465, 0.16666667
  %v530 = vmul.f32 %v466, 0.16666667
  %v531 = vmul.f32 %v467, 0.16666667
  %v532 = vmul.f32 %v468, 0.16666667
  %v533 = vmul.f32 %v469, 0.16666667
  %534 = vst [vmem:[%s3] sm:$0xff] %v470
  %535 = vst [vmem:[%s3 + $0x8] sm:$0xff] %v471
  %536 = vst [vmem:[%s3 + $0x10] sm:$0xff] %v472
  %537 = vst [vmem:[%s3 + $0x18] sm:$0xff] %v473
  %538 = vst [vmem:[%s3 + $0x20] sm:$0xff] %v474
  %539 = vst [vmem:[%s3 + $0x28] sm:$0xff] %v475
  %540 = vst [vmem:[%s3 + $0x30] sm:$0xff] %v476
  %541 = vst [vmem:[%s3 + $0x38] sm:$0xff] %v477
  %542 = vst [vmem:[%s3 + $0x40] sm:$0xff] %v478
  %543 = vst [vmem:[%s3 + $0x48] sm:$0xff] %v479
  %544 = vst [vmem:[%s3 + $0x50] sm:$0xff] %v480
  %545 = vst [vmem:[%s3 + $0x58] sm:$0xff] %v481
  %546 = vst [vmem:[%s3 + $0x60] sm:$0xff] %v482
  %547 = vst [vmem:[%s3 + $0x68] sm:$0xff] %v483
  %548 = vst [vmem:[%s3 + $0x70] sm:$0xff] %v484
  %549 = vst [vmem:[%s3 + $0x78] sm:$0xff] %v485
  %550 = vst [vmem:[%s3 + $0x80] sm:$0xff] %v486
  %551 = vst [vmem:[%s3 + $0x88] sm:$0xff] %v487
  %552 = vst [vmem:[%s3 + $0x90] sm:$0xff] %v488
  %553 = vst [vmem:[%s3 + $0x98] sm:$0xff] %v489
  %554 = vst [vmem:[%s3 + $0xa0] sm:$0xff] %v490
  %555 = vst [vmem:[%s3 + $0xa8] sm:$0xff] %v491
  %556 = vst [vmem:[%s3 + $0xb0] sm:$0xff] %v492
  %557 = vst [vmem:[%s3 + $0xb8] sm:$0xff] %v493
  %558 = vst [vmem:[%s3 + $0xc0] sm:$0xff] %v494
  %559 = vst [vmem:[%s3 + $0xc8] sm:$0xff] %v495
  %560 = vst [vmem:[%s3 + $0xd0] sm:$0xff] %v496
  %561 = vst [vmem:[%s3 + $0xd8] sm:$0xff] %v497
  %562 = vst [vmem:[%s3 + $0xe0] sm:$0xff] %v498
  %563 = vst [vmem:[%s3 + $0xe8] sm:$0xff] %v499
  %564 = vst [vmem:[%s3 + $0xf0] sm:$0xff] %v500
  %565 = vst [vmem:[%s3 + $0xf8] sm:$0xff] %v501
  %566 = vst [vmem:[%s3 + $0x100] sm:$0xff] %v502
  %567 = vst [vmem:[%s3 + $0x108] sm:$0xff] %v503
  %568 = vst [vmem:[%s3 + $0x110] sm:$0xff] %v504
  %569 = vst [vmem:[%s3 + $0x118] sm:$0xff] %v505
  %570 = vst [vmem:[%s3 + $0x120] sm:$0xff] %v506
  %571 = vst [vmem:[%s3 + $0x128] sm:$0xff] %v507
  %572 = vst [vmem:[%s3 + $0x130] sm:$0xff] %v508
  %573 = vst [vmem:[%s3 + $0x138] sm:$0xff] %v509
  %574 = vst [vmem:[%s3 + $0x140] sm:$0xff] %v510
  %575 = vst [vmem:[%s3 + $0x148] sm:$0xff] %v511
  %576 = vst [vmem:[%s3 + $0x150] sm:$0xff] %v512
  %577 = vst [vmem:[%s3 + $0x158] sm:$0xff] %v513
  %578 = vst [vmem:[%s3 + $0x160] sm:$0xff] %v514
  %579 = vst [vmem:[%s3 + $0x168] sm:$0xff] %v515
  %580 = vst [vmem:[%s3 + $0x170] sm:$0xff] %v516
  %581 = vst [vmem:[%s3 + $0x178] sm:$0xff] %v517
  %582 = vst [vmem:[%s3 + $0x180] sm:$0xff] %v518
  %583 = vst [vmem:[%s3 + $0x188] sm:$0xff] %v519
  %584 = vst [vmem:[%s3 + $0x190] sm:$0xff] %v520
  %585 = vst [vmem:[%s3 + $0x198] sm:$0xff] %v521
  %586 = vst [vmem:[%s3 + $0x1a0] sm:$0xff] %v522
  %587 = vst [vmem:[%s3 + $0x1a8] sm:$0xff] %v523
  %588 = vst [vmem:[%s3 + $0x1b0] sm:$0xff] %v524
  %589 = vst [vmem:[%s3 + $0x1b8] sm:$0xff] %v525
  %590 = vst [vmem:[%s3 + $0x1c0] sm:$0xff] %v526
  %591 = vst [vmem:[%s3 + $0x1c8] sm:$0xff] %v527
  %592 = vst [vmem:[%s3 + $0x1d0] sm:$0xff] %v528
  %593 = vst [vmem:[%s3 + $0x1d8] sm:$0xff] %v529
  %594 = vst [vmem:[%s3 + $0x1e0] sm:$0xff] %v530
  %595 = vst [vmem:[%s3 + $0x1e8] sm:$0xff] %v531
  %596 = vst [vmem:[%s3 + $0x1f0] sm:$0xff] %v532
  %597 = vst [vmem:[%s3 + $0x1f8] sm:$0xff] %v533
  // Predicated region
  $region14: #{dwconv2d_bn.3} parent=0 // pred_check
    _
  $region15: #{dwconv2d_bn.3} parent=0 // pred_check_branch
    %599 = sbr.rel (0) target = $region17
  $region16: #{dwconv2d_bn.3} parent=0 // pred_region
    _
  $region17: #{dwconv2d_bn.3} parent=0 // pred_fallthru
    _
  // Predicated region
  $region18: #{dwconv2d_bn.3} parent=0 // pred_check
    _
  $region19: #{dwconv2d_bn.3} parent=0 // pred_check_branch
    %601 = sbr.rel (0) target = $region21
  $region20: #{dwconv2d_bn.3} parent=0 // pred_region
    _
  $region21: #{dwconv2d_bn.3} parent=0 // pred_fallthru
    _

// kernel: dwconv2d_bn.2
$region0: #{dwconv2d_bn.2}
  #allocation0 [shape = 'u32[]', space=smem, size = 0x4, offset = 0x4, fixed_abs, tag = 'smem constant byte address 0x4 - core index']
  #allocation1 [shape = 'u32[72,128]{1,0:T(1,128)}', space=vmem, size = 0x9000, scoped, tag = 'internal scratch']
  %s0 = inlined_call_operand.vmem [shape: f32[2,18,18,128], index: 0, kind: input, shape index: {}]
  %s1 = inlined_call_operand.vmem [shape: f32[9,128], index: 1, kind: input, shape index: {}]
  %s2 = inlined_call_operand.vmem [shape: bf16[128,128], index: 2, kind: input, shape index: {}]
  %s3 = inlined_call_operand.vmem [shape: f32[512,128], index: 3, kind: output, shape index: {0}]
  %s4 = inlined_call_operand.vmem [shape: f32[2,1,128], index: 4, kind: output, shape index: {1}]
  %s5 = inlined_call_operand.vmem [shape: f32[2,1,128], index: 5, kind: output, shape index: {2}]
  %6 = xla_tuple %s3, %s4, %s5
  %s7 = sld [smem:[#allocation0]]
  $region65: #{dwconv2d_bn.2} parent=0
    _
  %s9 = ssub.s32 1, %s7
  %s10 = scalar_select 0, %s9, %s7
  loop: start=0, step=1, limit=6
  $region2: #{dwconv2d_bn.2} parent=0 // loop_pre_header
    _
  $region3: #{dwconv2d_bn.2} parent=0 // loop_header
    %s12 = sphi 0, %s16
    %p13 = scmp.ge.s32.totalorder %s12, 6
    %s19 = sphi 0, %s31
    %s20 = sphi 0, %s27
    %s21 = sphi 0, %s19
    %s22 = sphi 0, %s20
    %s23 = sphi 0, %s21
    %s24 = sphi 0, %s22
    %s34 = sphi 0, %s36
    %s37 = sphi 0, %s34
    %s38 = sphi 0, %s37
    %s54 = sphi 0, %s38
    %s58 = sphi 0, %s58
    %s60 = sphi 0, %s58
    %s61 = sphi 0, %s60
    %s75 = sphi 0, %s61
    %s79 = sphi 0, %s79
    %s81 = sphi 0, %s79
    %s82 = sphi 0, %s81
    %s96 = sphi 0, %s82
    %s106 = sphi 0, %s108
    %s109 = sphi 0, %s106
    %s110 = sphi 0, %s109
    %s126 = sphi 0, %s110
    %s132 = sphi 0, %s134
    %s135 = sphi 0, %s132
    %s136 = sphi 0, %s135
    %s152 = sphi 0, %s136
    %s158 = sphi 0, %s160
    %s161 = sphi 0, %s158
    %s162 = sphi 0, %s161
    %s178 = sphi 0, %s162
  $region4: #{dwconv2d_bn.2} parent=0 // loop_header_branch
    %15 = sbr.rel (%p13) target = $region8
  $region5: #{dwconv2d_bn.2} parent=0 // loop_body
    %s17 = ssub.s32 %s12, 1
    %s18 = ssub.s32 %s12, 2
    %s25 = sadd.s32 1, %s20
    %p26 = scmp.ge.s32.totalorder %s25, 2
    %s27 = scalar_select %p26, 0, %s25
    %s28 = sadd.s32 1, %s19
    %s29 = scalar_select %p26, %s28, %s19
    %p30 = scmp.ge.s32.totalorder %s29, 2
    %s31 = scalar_select %p30, 0, %s29
    %s32 = ssub.s32 %s19, %s31
    %p33 = scmp.eq.s32.totalorder %s32, 0
    %s35 = sadd.s32 %s34, 1
    %s36 = scalar_select %p33, %s34, %s35
    %p39 = pneg %p33
    %p40 = scmp.eq.s32.totalorder %s12, 3
    %p41 = por %p39, %p40
    %p42 = scmp.ne.s32.totalorder %s34, %s37
    %p43 = scmp.eq.s32.totalorder %s12, 0
    %p44 = por %p42, %p43
    %p45 = scmp.ne.s32.totalorder %s34, %s37
    %p46 = scmp.eq.s32.totalorder %s17, 3
    %p47 = por %p45, %p46
    %p48 = scmp.ne.s32.totalorder %s37, %s38
    %p49 = scmp.eq.s32.totalorder %s17, 0
    %p50 = por %p48, %p49
    %p51 = scmp.ne.s32.totalorder %s37, %s38
    %p52 = scmp.eq.s32.totalorder %s18, 3
    %p53 = por %p51, %p52
    %p55 = scmp.ne.s32.totalorder %s38, %s54
    %p56 = scmp.eq.s32.totalorder %s18, 0
    %p57 = por %p55, %p56
    %s59 = sadd.s32 %s58, 1
    %p62 = scmp.eq.s32.totalorder %s12, 3
    %p63 = scmp.ne.s32.totalorder %s58, %s60
    %p64 = scmp.eq.s32.totalorder %s12, 0
    %p65 = por %p63, %p64
    %p66 = scmp.ne.s32.totalorder %s58, %s60
    %p67 = scmp.eq.s32.totalorder %s17, 3
    %p68 = por %p66, %p67
    %p69 = scmp.ne.s32.totalorder %s60, %s61
    %p70 = scmp.eq.s32.totalorder %s17, 0
    %p71 = por %p69, %p70
    %p72 = scmp.ne.s32.totalorder %s60, %s61
    %p73 = scmp.eq.s32.totalorder %s18, 3
    %p74 = por %p72, %p73
    %p76 = scmp.ne.s32.totalorder %s61, %s75
    %p77 = scmp.eq.s32.totalorder %s18, 0
    %p78 = por %p76, %p77
    %s80 = sadd.s32 %s79, 1
    %p83 = scmp.eq.s32.totalorder %s12, 3
    %p84 = scmp.ne.s32.totalorder %s79, %s81
    %p85 = scmp.eq.s32.totalorder %s12, 0
    %p86 = por %p84, %p85
    %p87 = scmp.ne.s32.totalorder %s79, %s81
    %p88 = scmp.eq.s32.totalorder %s17, 3
    %p89 = por %p87, %p88
    %p90 = scmp.ne.s32.totalorder %s81, %s82
    %p91 = scmp.eq.s32.totalorder %s17, 0
    %p92 = por %p90, %p91
    %p93 = scmp.ne.s32.totalorder %s81, %s82
    %p94 = scmp.eq.s32.totalorder %s18, 3
    %p95 = por %p93, %p94
    %p97 = scmp.ne.s32.totalorder %s82, %s96
    %p98 = scmp.eq.s32.totalorder %s18, 0
    %p99 = por %p97, %p98
    %s100 = smul.u32 %s19, 2
    %s101 = sadd.s32 %s100, %s20
    %s102 = smul.u32 %s31, 2
    %s103 = sadd.s32 %s102, %s27
    %s104 = ssub.s32 %s101, %s103
    %p105 = scmp.eq.s32.totalorder %s104, 0
    %s107 = sadd.s32 %s106, 1
    %s108 = scalar_select %p105, %s106, %s107
    %p111 = pneg %p105
    %p112 = scmp.eq.s32.totalorder %s12, 3
    %p113 = por %p111, %p112
    %p114 = scmp.ne.s32.totalorder %s106, %s109
    %p115 = scmp.eq.s32.totalorder %s12, 0
    %p116 = por %p114, %p115
    %p117 = scmp.ne.s32.totalorder %s106, %s109
    %p118 = scmp.eq.s32.totalorder %s17, 3
    %p119 = por %p117, %p118
    %p120 = scmp.ne.s32.totalorder %s109, %s110
    %p121 = scmp.eq.s32.totalorder %s17, 0
    %p122 = por %p120, %p121
    %p123 = scmp.ne.s32.totalorder %s109, %s110
    %p124 = scmp.eq.s32.totalorder %s18, 3
    %p125 = por %p123, %p124
    %p127 = scmp.ne.s32.totalorder %s110, %s126
    %p128 = scmp.eq.s32.totalorder %s18, 0
    %p129 = por %p127, %p128
    %s130 = ssub.s32 %s19, %s31
    %p131 = scmp.eq.s32.totalorder %s130, 0
    %s133 = sadd.s32 %s132, 1
    %s134 = scalar_select %p131, %s132, %s133
    %p137 = pneg %p131
    %p138 = scmp.eq.s32.totalorder %s12, 3
    %p139 = por %p137, %p138
    %p140 = scmp.ne.s32.totalorder %s132, %s135
    %p141 = scmp.eq.s32.totalorder %s12, 0
    %p142 = por %p140, %p141
    %p143 = scmp.ne.s32.totalorder %s132, %s135
    %p144 = scmp.eq.s32.totalorder %s17, 3
    %p145 = por %p143, %p144
    %p146 = scmp.ne.s32.totalorder %s135, %s136
    %p147 = scmp.eq.s32.totalorder %s17, 0
    %p148 = por %p146, %p147
    %p149 = scmp.ne.s32.totalorder %s135, %s136
    %p150 = scmp.eq.s32.totalorder %s18, 3
    %p151 = por %p149, %p150
    %p153 = scmp.ne.s32.totalorder %s136, %s152
    %p154 = scmp.eq.s32.totalorder %s18, 0
    %p155 = por %p153, %p154
    %s156 = ssub.s32 %s19, %s31
    %p157 = scmp.eq.s32.totalorder %s156, 0
    %s159 = sadd.s32 %s158, 1
    %s160 = scalar_select %p157, %s158, %s159
    %p163 = pneg %p157
    %p164 = scmp.eq.s32.totalorder %s12, 3
    %p165 = por %p163, %p164
    %p166 = scmp.ne.s32.totalorder %s158, %s161
    %p167 = scmp.eq.s32.totalorder %s12, 0
    %p168 = por %p166, %p167
    %p169 = scmp.ne.s32.totalorder %s158, %s161
    %p170 = scmp.eq.s32.totalorder %s17, 3
    %p171 = por %p169, %p170
    %p172 = scmp.ne.s32.totalorder %s161, %s162
    %p173 = scmp.eq.s32.totalorder %s17, 0
    %p174 = por %p172, %p173
    %p175 = scmp.ne.s32.totalorder %s161, %s162
    %p176 = scmp.eq.s32.totalorder %s18, 3
    %p177 = por %p175, %p176
    %p179 = scmp.ne.s32.totalorder %s162, %s178
    %p180 = scmp.eq.s32.totalorder %s18, 0
    %p181 = por %p179, %p180
    %p182 = scmp.le.s32.totalorder 1, %s12
    %p183 = scmp.lt.s32.totalorder %s12, 5
    %p184 = pnand %p182, %p183
    %p185 = pneg %p184
    // Predicated region
    $region9: #{dwconv2d_bn.2} parent=5 // pred_check
      _
    $region10: #{dwconv2d_bn.2} parent=5 // pred_check_branch
      %187 = sbr.rel (%p184) target = $region12
    $region11: #{dwconv2d_bn.2} parent=5 // pred_region
      %s188 = ssub.s32 %s12, 1
      // Predicated region
      $region13: #{dwconv2d_bn.2} parent=11 // pred_check
        %p189 = pneg %p71
      $region14: #{dwconv2d_bn.2} parent=11 // pred_check_branch
        %191 = sbr.rel (%p189) target = $region16
      $region15: #{dwconv2d_bn.2} parent=11 // pred_region
        _
      $region16: #{dwconv2d_bn.2} parent=11 // pred_fallthru
        _
      // Predicated region
      $region17: #{dwconv2d_bn.2} parent=11 // pred_check
        %p192 = pneg %p92
      $region18: #{dwconv2d_bn.2} parent=11 // pred_check_branch
        %194 = sbr.rel (%p192) target = $region20
      $region19: #{dwconv2d_bn.2} parent=11 // pred_region
        _
      $region20: #{dwconv2d_bn.2} parent=11 // pred_fallthru
        _
    $region12: #{dwconv2d_bn.2} parent=5 // pred_fallthru
      _
    %p195 = scmp.lt.s32.totalorder %s12, 4
    // Predicated region
    $region21: #{dwconv2d_bn.2} parent=5 // pred_check
      %p196 = pneg %p195
    $region22: #{dwconv2d_bn.2} parent=5 // pred_check_branch
      %198 = sbr.rel (%p196) target = $region24
    $region23: #{dwconv2d_bn.2} parent=5 // pred_region
      // Predicated region
      $region25: #{dwconv2d_bn.2} parent=23 // pred_check
        %p199 = pneg %p44
      $region26: #{dwconv2d_bn.2} parent=23 // pred_check_branch
        %201 = sbr.rel (%p199) target = $region28
      $region27: #{dwconv2d_bn.2} parent=23 // pred_region
        %p202 = scmp.lt.s32.totalorder %s19, 1
        %s203 = scalar_select %p202, %s19, 1
        %s204 = smul.addr %s203, 54
        %s205 = smul.addr %s204, 8
        %s206 = scalar_lea.vmem %s0, %s205
      $region28: #{dwconv2d_bn.2} parent=23 // pred_fallthru
        _
    $region24: #{dwconv2d_bn.2} parent=5 // pred_fallthru
      _
    %p207 = scmp.le.s32.totalorder 1, %s12
    %p208 = scmp.lt.s32.totalorder %s12, 5
    %p209 = pnand %p207, %p208
    %p210 = pneg %p209
    // Predicated region
    $region29: #{dwconv2d_bn.2} parent=5 // pred_check
      _
    $region30: #{dwconv2d_bn.2} parent=5 // pred_check_branch
      %212 = sbr.rel (%p209) target = $region32
    $region31: #{dwconv2d_bn.2} parent=5 // pred_region
      %s213 = ssub.s32 %s12, 1
      %p214 = scmp.lt.s32.totalorder %s21, 1
      %s215 = scalar_select %p214, %s21, 1
      %s216 = smul.addr %s215, 54
      %s217 = smul.addr %s216, 8
      %s218 = scalar_lea.vmem %s0, %s217
      %p219 = pneg %p50
      %p220 = pneg %p47
      %p221 = pneg %p71
      %p222 = pneg %p68
      %p223 = pneg %p92
      %p224 = pneg %p89
      %p225 = pneg %p122
      %p226 = pneg %p119
      %s227 = smul.u32 %s21, 2
      %s228 = sadd.s32 %s227, %s22
      %s229 = smul.u32 16, %s228
      %p230 = scmp.lt.s32.totalorder %s229, 63
      %s231 = scalar_select %p230, %s229, 63
      %s232 = smul.addr %s231, 8
      %s233 = scalar_lea.vmem %s3, %s232
      %p234 = pneg %p148
      %p235 = pneg %p145
      %p236 = scmp.lt.s32.totalorder %s21, 1
      %s237 = scalar_select %p236, %s21, 1
      %s238 = scalar_lea.vmem %s4, %s237
      %p239 = pneg %p174
      %p240 = pneg %p171
      %p241 = scmp.lt.s32.totalorder %s21, 1
      %s242 = scalar_select %p241, %s21, 1
      %s243 = scalar_lea.vmem %s5, %s242
      %p244 = scmp.lt.s32.totalorder %s21, 1
      %s245 = scalar_select %p244, %s21, 1
      %s246 = smul.addr %s245, 54
      %s247 = smul.addr %s246, 8
      %s248 = scalar_lea.vmem %s0, %s247
      %s249 = smul.u32 %s21, 2
      %s250 = sadd.s32 %s249, %s22
      %s251 = smul.u32 16, %s250
      %p252 = scmp.lt.s32.totalorder %s251, 63
      %s253 = scalar_select %p252, %s251, 63
      %s254 = smul.addr %s253, 8
      %s255 = scalar_lea.vmem %s3, %s254
      %s256 = smul.u32 %s21, 2
      %s257 = sadd.s32 %s256, %s22
      %s258 = smul.u32 16, %s257
      %p259 = scmp.lt.s32.totalorder %s21, 1
      %s260 = scalar_select %p259, %s21, 1
      %s261 = scalar_lea.vmem %s4, %s260
      %p262 = scmp.lt.s32.totalorder %s21, 1
      %s263 = scalar_select %p262, %s21, 1
      %s264 = scalar_lea.vmem %s5, %s263
      %s265 = smul.u32 %s22, 8
      %v266 = vld [vmem:[%s1] sm:$0xff]
      %v267 = vld [vmem:[%s1 + $0x8] sm:$0x1]
      %s268 = smul.u32 %s265, 24
      %s269 = scalar_lea.vmem %s248, %s268
      %v270 = vld [vmem:[%s269] sm:$0xff]
      %v271 = vld [vmem:[%s269 + $0x8] sm:$0xff]
      %v272 = vld [vmem:[%s269 + $0x18] sm:$0xff]
      %v273 = vld [vmem:[%s269 + $0x20] sm:$0xff]
      %v274 = vld [vmem:[%s269 + $0x30] sm:$0xff]
      %v275 = vld [vmem:[%s269 + $0x38] sm:$0xff]
      %v276 = vld [vmem:[%s269 + $0x48] sm:$0xff]
      %v277 = vld [vmem:[%s269 + $0x50] sm:$0xff]
      %v278 = vld [vmem:[%s269 + $0x60] sm:$0xff]
      %v279 = vld [vmem:[%s269 + $0x68] sm:$0xff]
      %v280 = vld [vmem:[%s269 + $0x78] sm:$0xff]
      %v281 = vld [vmem:[%s269 + $0x80] sm:$0xff]
      %v282 = vld [vmem:[%s269 + $0x90] sm:$0xff]
      %v283 = vld [vmem:[%s269 + $0x98] sm:$0xff]
      %v284 = vld [vmem:[%s269 + $0xa8] sm:$0xff]
      %v285 = vld [vmem:[%s269 + $0xb0] sm:$0xff]
      %v286 = vperm.slane %v266, 0
      %v287 = vmul.f32 %v270, %v286
      %v288 = vmul.f32 %v271, %v286
      %v289 = vmul.f32 %v272, %v286
      %v290 = vmul.f32 %v273, %v286
      %v291 = vmul.f32 %v274, %v286
      %v292 = vmul.f32 %v275, %v286
      %v293 = vmul.f32 %v276, %v286
      %v294 = vmul.f32 %v277, %v286
      %v295 = vmul.f32 %v278, %v286
      %v296 = vmul.f32 %v279, %v286
      %v297 = vmul.f32 %v280, %v286
      %v298 = vmul.f32 %v281, %v286
      %v299 = vmul.f32 %v282, %v286
      %v300 = vmul.f32 %v283, %v286
      %v301 = vmul.f32 %v284, %v286
      %v302 = vmul.f32 %v285, %v286
      %v303 = vld [vmem:[%s269 + $0x1] sm:$0xff]
      %v304 = vld [vmem:[%s269 + $0x9] sm:$0xff]
      %v305 = vld [vmem:[%s269 + $0x19] sm:$0xff]
      %v306 = vld [vmem:[%s269 + $0x21] sm:$0xff]
      %v307 = vld [vmem:[%s269 + $0x31] sm:$0xff]
      %v308 = vld [vmem:[%s269 + $0x39] sm:$0xff]
      %v309 = vld [vmem:[%s269 + $0x49] sm:$0xff]
      %v310 = vld [vmem:[%s269 + $0x51] sm:$0xff]
      %v311 = vld [vmem:[%s269 + $0x61] sm:$0xff]
      %v312 = vld [vmem:[%s269 + $0x69] sm:$0xff]
      %v313 = vld [vmem:[%s269 + $0x79] sm:$0xff]
      %v314 = vld [vmem:[%s269 + $0x81] sm:$0xff]
      %v315 = vld [vmem:[%s269 + $0x91] sm:$0xff]
      %v316 = vld [vmem:[%s269 + $0x99] sm:$0xff]
      %v317 = vld [vmem:[%s269 + $0xa9] sm:$0xff]
      %v318 = vld [vmem:[%s269 + $0xb1] sm:$0xff]
      %v319 = vperm.slane %v266, 1
      %v320 = vmul.f32 %v303, %v319
      %v321 = vmul.f32 %v304, %v319
      %v322 = vmul.f32 %v305, %v319
      %v323 = vmul.f32 %v306, %v319
      %v324 = vmul.f32 %v307, %v319
      %v325 = vmul.f32 %v308, %v319
      %v326 = vmul.f32 %v309, %v319
      %v327 = vmul.f32 %v310, %v319
      %v328 = vmul.f32 %v311, %v319
      %v329 = vmul.f32 %v312, %v319
      %v330 = vmul.f32 %v313, %v319
      %v331 = vmul.f32 %v314, %v319
      %v332 = vmul.f32 %v315, %v319
      %v333 = vmul.f32 %v316, %v319
      %v334 = vmul.f32 %v317, %v319
      %v335 = vmul.f32 %v318, %v319
      %v336 = vadd.f32 %v287, %v320
      %v337 = vadd.f32 %v288, %v321
      %v338 = vadd.f32 %v289, %v322
      %v339 = vadd.f32 %v290, %v323
      %v340 = vadd.f32 %v291, %v324
      %v341 = vadd.f32 %v292, %v325
      %v342 = vadd.f32 %v293, %v326
      %v343 = vadd.f32 %v294, %v327
      %v344 = vadd.f32 %v295, %v328
      %v345 = vadd.f32 %v296, %v329
      %v346 = vadd.f32 %v297, %v330
      %v347 = vadd.f32 %v298, %v331
      %v348 = vadd.f32 %v299, %v332
      %v349 = vadd.f32 %v300, %v333
      %v350 = vadd.f32 %v301, %v334
      %v351 = vadd.f32 %v302, %v335
      %v352 = vld [vmem:[%s269 + $0x2] sm:$0xff]
      %v353 = vld [vmem:[%s269 + $0xa] sm:$0xff]
      %v354 = vld [vmem:[%s269 + $0x1a] sm:$0xff]
      %v355 = vld [vmem:[%s269 + $0x22] sm:$0xff]
      %v356 = vld [vmem:[%s269 + $0x32] sm:$0xff]
      %v357 = vld [vmem:[%s269 + $0x3a] sm:$0xff]
      %v358 = vld [vmem:[%s269 + $0x4a] sm:$0xff]
      %v359 = vld [vmem:[%s269 + $0x52] sm:$0xff]
      %v360 = vld [vmem:[%s269 + $0x62] sm:$0xff]
      %v361 = vld [vmem:[%s269 + $0x6a] sm:$0xff]
      %v362 = vld [vmem:[%s269 + $0x7a] sm:$0xff]
      %v363 = vld [vmem:[%s269 + $0x82] sm:$0xff]
      %v364 = vld [vmem:[%s269 + $0x92] sm:$0xff]
      %v365 = vld [vmem:[%s269 + $0x9a] sm:$0xff]
      %v366 = vld [vmem:[%s269 + $0xaa] sm:$0xff]
      %v367 = vld [vmem:[%s269 + $0xb2] sm:$0xff]
      %v368 = vperm.slane %v266, 2
      %v369 = vmul.f32 %v352, %v368
      %v370 = vmul.f32 %v353, %v368
      %v371 = vmul.f32 %v354, %v368
      %v372 = vmul.f32 %v355, %v368
      %v373 = vmul.f32 %v356, %v368
      %v374 = vmul.f32 %v357, %v368
      %v375 = vmul.f32 %v358, %v368
      %v376 = vmul.f32 %v359, %v368
      %v377 = vmul.f32 %v360, %v368
      %v378 = vmul.f32 %v361, %v368
      %v379 = vmul.f32 %v362, %v368
      %v380 = vmul.f32 %v363, %v368
      %v381 = vmul.f32 %v364, %v368
      %v382 = vmul.f32 %v365, %v368
      %v383 = vmul.f32 %v366, %v368
      %v384 = vmul.f32 %v367, %v368
      %v385 = vadd.f32 %v336, %v369
      %v386 = vadd.f32 %v337, %v370
      %v387 = vadd.f32 %v338, %v371
      %v388 = vadd.f32 %v339, %v372
      %v389 = vadd.f32 %v340, %v373
      %v390 = vadd.f32 %v341, %v374
      %v391 = vadd.f32 %v342, %v375
      %v392 = vadd.f32 %v343, %v376
      %v393 = vadd.f32 %v344, %v377
      %v394 = vadd.f32 %v345, %v378
      %v395 = vadd.f32 %v346, %v379
      %v396 = vadd.f32 %v347, %v380
      %v397 = vadd.f32 %v348, %v381
      %v398 = vadd.f32 %v349, %v382
      %v399 = vadd.f32 %v350, %v383
      %v400 = vadd.f32 %v351, %v384
      %s401 = sadd.s32 %s265, 1
      %s402 = smul.u32 %s401, 24
      %s403 = scalar_lea.vmem %s248, %s402
      %v404 = vld [vmem:[%s403] sm:$0xff]
      %v405 = vld [vmem:[%s403 + $0x8] sm:$0xff]
      %v406 = vld [vmem:[%s403 + $0x18] sm:$0xff]
      %v407 = vld [vmem:[%s403 + $0x20] sm:$0xff]
      %v408 = vld [vmem:[%s403 + $0x30] sm:$0xff]
      %v409 = vld [vmem:[%s403 + $0x38] sm:$0xff]
      %v410 = vld [vmem:[%s403 + $0x48] sm:$0xff]
      %v411 = vld [vmem:[%s403 + $0x50] sm:$0xff]
      %v412 = vld [vmem:[%s403 + $0x60] sm:$0xff]
      %v413 = vld [vmem:[%s403 + $0x68] sm:$0xff]
      %v414 = vld [vmem:[%s403 + $0x78] sm:$0xff]
      %v415 = vld [vmem:[%s403 + $0x80] sm:$0xff]
      %v416 = vld [vmem:[%s403 + $0x90] sm:$0xff]
      %v417 = vld [vmem:[%s403 + $0x98] sm:$0xff]
      %v418 = vld [vmem:[%s403 + $0xa8] sm:$0xff]
      %v419 = vld [vmem:[%s403 + $0xb0] sm:$0xff]
      %v420 = vperm.slane %v266, 3
      %v421 = vmul.f32 %v404, %v420
      %v422 = vmul.f32 %v405, %v420
      %v423 = vmul.f32 %v406, %v420
      %v424 = vmul.f32 %v407, %v420
      %v425 = vmul.f32 %v408, %v420
      %v426 = vmul.f32 %v409, %v420
      %v427 = vmul.f32 %v410, %v420
      %v428 = vmul.f32 %v411, %v420
      %v429 = vmul.f32 %v412, %v420
      %v430 = vmul.f32 %v413, %v420
      %v431 = vmul.f32 %v414, %v420
      %v432 = vmul.f32 %v415, %v420
      %v433 = vmul.f32 %v416, %v420
      %v434 = vmul.f32 %v417, %v420
      %v435 = vmul.f32 %v418, %v420
      %v436 = vmul.f32 %v419, %v420
      %v437 = vadd.f32 %v385, %v421
      %v438 = vadd.f32 %v386, %v422
      %v439 = vadd.f32 %v387, %v423
      %v440 = vadd.f32 %v388, %v424
      %v441 = vadd.f32 %v389, %v425
      %v442 = vadd.f32 %v390, %v426
      %v443 = vadd.f32 %v391, %v427
      %v444 = vadd.f32 %v392, %v428
      %v445 = vadd.f32 %v393, %v429
      %v446 = vadd.f32 %v394, %v430
      %v447 = vadd.f32 %v395, %v431
      %v448 = vadd.f32 %v396, %v432
      %v449 = vadd.f32 %v397, %v433
      %v450 = vadd.f32 %v398, %v434
      %v451 = vadd.f32 %v399, %v435
      %v452 = vadd.f32 %v400, %v436
      %v453 = vld [vmem:[%s403 + $0x1] sm:$0xff]
      %v454 = vld [vmem:[%s403 + $0x9] sm:$0xff]
      %v455 = vld [vmem:[%s403 + $0x19] sm:$0xff]
      %v456 = vld [vmem:[%s403 + $0x21] sm:$0xff]
      %v457 = vld [vmem:[%s403 + $0x31] sm:$0xff]
      %v458 = vld [vmem:[%s403 + $0x39] sm:$0xff]
      %v459 = vld [vmem:[%s403 + $0x49] sm:$0xff]
      %v460 = vld [vmem:[%s403 + $0x51] sm:$0xff]
      %v461 = vld [vmem:[%s403 + $0x61] sm:$0xff]
      %v462 = vld [vmem:[%s403 + $0x69] sm:$0xff]
      %v463 = vld [vmem:[%s403 + $0x79] sm:$0xff]
      %v464 = vld [vmem:[%s403 + $0x81] sm:$0xff]
      %v465 = vld [vmem:[%s403 + $0x91] sm:$0xff]
      %v466 = vld [vmem:[%s403 + $0x99] sm:$0xff]
      %v467 = vld [vmem:[%s403 + $0xa9] sm:$0xff]
      %v468 = vld [vmem:[%s403 + $0xb1] sm:$0xff]
      %v469 = vperm.slane %v266, 4
      %v470 = vmul.f32 %v453, %v469
      %v471 = vmul.f32 %v454, %v469
      %v472 = vmul.f32 %v455, %v469
      %v473 = vmul.f32 %v456, %v469
      %v474 = vmul.f32 %v457, %v469
      %v475 = vmul.f32 %v458, %v469
      %v476 = vmul.f32 %v459, %v469
      %v477 = vmul.f32 %v460, %v469
      %v478 = vmul.f32 %v461, %v469
      %v479 = vmul.f32 %v462, %v469
      %v480 = vmul.f32 %v463, %v469
      %v481 = vmul.f32 %v464, %v469
      %v482 = vmul.f32 %v465, %v469
      %v483 = vmul.f32 %v466, %v469
      %v484 = vmul.f32 %v467, %v469
      %v485 = vmul.f32 %v468, %v469
      %v486 = vadd.f32 %v437, %v470
      %v487 = vadd.f32 %v438, %v471
      %v488 = vadd.f32 %v439, %v472
      %v489 = vadd.f32 %v440, %v473
      %v490 = vadd.f32 %v441, %v474
      %v491 = vadd.f32 %v442, %v475
      %v492 = vadd.f32 %v443, %v476
      %v493 = vadd.f32 %v444, %v477
      %v494 = vadd.f32 %v445, %v478
      %v495 = vadd.f32 %v446, %v479
      %v496 = vadd.f32 %v447, %v480
      %v497 = vadd.f32 %v448, %v481
      %v498 = vadd.f32 %v449, %v482
      %v499 = vadd.f32 %v450, %v483
      %v500 = vadd.f32 %v451, %v484
      %v501 = vadd.f32 %v452, %v485
      %v502 = vld [vmem:[%s403 + $0x2] sm:$0xff]
      %v503 = vld [vmem:[%s403 + $0xa] sm:$0xff]
      %v504 = vld [vmem:[%s403 + $0x1a] sm:$0xff]
      %v505 = vld [vmem:[%s403 + $0x22] sm:$0xff]
      %v506 = vld [vmem:[%s403 + $0x32] sm:$0xff]
      %v507 = vld [vmem:[%s403 + $0x3a] sm:$0xff]
      %v508 = vld [vmem:[%s403 + $0x4a] sm:$0xff]
      %v509 = vld [vmem:[%s403 + $0x52] sm:$0xff]
      %v510 = vld [vmem:[%s403 + $0x62] sm:$0xff]
      %v511 = vld [vmem:[%s403 + $0x6a] sm:$0xff]
      %v512 = vld [vmem:[%s403 + $0x7a] sm:$0xff]
      %v513 = vld [vmem:[%s403 + $0x82] sm:$0xff]
      %v514 = vld [vmem:[%s403 + $0x92] sm:$0xff]
      %v515 = vld [vmem:[%s403 + $0x9a] sm:$0xff]
      %v516 = vld [vmem:[%s403 + $0xaa] sm:$0xff]
      %v517 = vld [vmem:[%s403 + $0xb2] sm:$0xff]
      %v518 = vperm.slane %v266, 5
      %v519 = vmul.f32 %v502, %v518
      %v520 = vmul.f32 %v503, %v518
      %v521 = vmul.f32 %v504, %v518
      %v522 = vmul.f32 %v505, %v518
      %v523 = vmul.f32 %v506, %v518
      %v524 = vmul.f32 %v507, %v518
      %v525 = vmul.f32 %v508, %v518
      %v526 = vmul.f32 %v509, %v518
      %v527 = vmul.f32 %v510, %v518
      %v528 = vmul.f32 %v511, %v518
      %v529 = vmul.f32 %v512, %v518
      %v530 = vmul.f32 %v513, %v518
      %v531 = vmul.f32 %v514, %v518
      %v532 = vmul.f32 %v515, %v518
      %v533 = vmul.f32 %v516, %v518
      %v534 = vmul.f32 %v517, %v518
      %v535 = vadd.f32 %v486, %v519
      %v536 = vadd.f32 %v487, %v520
      %v537 = vadd.f32 %v488, %v521
      %v538 = vadd.f32 %v489, %v522
      %v539 = vadd.f32 %v490, %v523
      %v540 = vadd.f32 %v491, %v524
      %v541 = vadd.f32 %v492, %v525
      %v542 = vadd.f32 %v493, %v526
      %v543 = vadd.f32 %v494, %v527
      %v544 = vadd.f32 %v495, %v528
      %v545 = vadd.f32 %v496, %v529
      %v546 = vadd.f32 %v497, %v530
      %v547 = vadd.f32 %v498, %v531
      %v548 = vadd.f32 %v499, %v532
      %v549 = vadd.f32 %v500, %v533
      %v550 = vadd.f32 %v501, %v534
      %s551 = sadd.s32 %s265, 2
      %s552 = smul.u32 %s551, 24
      %s553 = scalar_lea.vmem %s248, %s552
      %v554 = vld [vmem:[%s553] sm:$0xff]
      %v555 = vld [vmem:[%s553 + $0x8] sm:$0xff]
      %v556 = vld [vmem:[%s553 + $0x18] sm:$0xff]
      %v557 = vld [vmem:[%s553 + $0x20] sm:$0xff]
      %v558 = vld [vmem:[%s553 + $0x30] sm:$0xff]
      %v559 = vld [vmem:[%s553 + $0x38] sm:$0xff]
      %v560 = vld [vmem:[%s553 + $0x48] sm:$0xff]
      %v561 = vld [vmem:[%s553 + $0x50] sm:$0xff]
      %v562 = vld [vmem:[%s553 + $0x60] sm:$0xff]
      %v563 = vld [vmem:[%s553 + $0x68] sm:$0xff]
      %v564 = vld [vmem:[%s553 + $0x78] sm:$0xff]
      %v565 = vld [vmem:[%s553 + $0x80] sm:$0xff]
      %v566 = vld [vmem:[%s553 + $0x90] sm:$0xff]
      %v567 = vld [vmem:[%s553 + $0x98] sm:$0xff]
      %v568 = vld [vmem:[%s553 + $0xa8] sm:$0xff]
      %v569 = vld [vmem:[%s553 + $0xb0] sm:$0xff]
      %v570 = vperm.slane %v266, 6
      %v571 = vmul.f32 %v554, %v570
      %v572 = vmul.f32 %v555, %v570
      %v573 = vmul.f32 %v556, %v570
      %v574 = vmul.f32 %v557, %v570
      %v575 = vmul.f32 %v558, %v570
      %v576 = vmul.f32 %v559, %v570
      %v577 = vmul.f32 %v560, %v570
      %v578 = vmul.f32 %v561, %v570
      %v579 = vmul.f32 %v562, %v570
      %v580 = vmul.f32 %v563, %v570
      %v581 = vmul.f32 %v564, %v570
      %v582 = vmul.f32 %v565, %v570
      %v583 = vmul.f32 %v566, %v570
      %v584 = vmul.f32 %v567, %v570
      %v585 = vmul.f32 %v568, %v570
      %v586 = vmul.f32 %v569, %v570
      %v587 = vadd.f32 %v535, %v571
      %v588 = vadd.f32 %v536, %v572
      %v589 = vadd.f32 %v537, %v573
      %v590 = vadd.f32 %v538, %v574
      %v591 = vadd.f32 %v539, %v575
      %v592 = vadd.f32 %v540, %v576
      %v593 = vadd.f32 %v541, %v577
      %v594 = vadd.f32 %v542, %v578
      %v595 = vadd.f32 %v543, %v579
      %v596 = vadd.f32 %v544, %v580
      %v597 = vadd.f32 %v545, %v581
      %v598 = vadd.f32 %v546, %v582
      %v599 = vadd.f32 %v547, %v583
      %v600 = vadd.f32 %v548, %v584
      %v601 = vadd.f32 %v549, %v585
      %v602 = vadd.f32 %v550, %v586
      %v603 = vld [vmem:[%s553 + $0x1] sm:$0xff]
      %v604 = vld [vmem:[%s553 + $0x9] sm:$0xff]
      %v605 = vld [vmem:[%s553 + $0x19] sm:$0xff]
      %v606 = vld [vmem:[%s553 + $0x21] sm:$0xff]
      %v607 = vld [vmem:[%s553 + $0x31] sm:$0xff]
      %v608 = vld [vmem:[%s553 + $0x39] sm:$0xff]
      %v609 = vld [vmem:[%s553 + $0x49] sm:$0xff]
      %v610 = vld [vmem:[%s553 + $0x51] sm:$0xff]
      %v611 = vld [vmem:[%s553 + $0x61] sm:$0xff]
      %v612 = vld [vmem:[%s553 + $0x69] sm:$0xff]
      %v613 = vld [vmem:[%s553 + $0x79] sm:$0xff]
      %v614 = vld [vmem:[%s553 + $0x81] sm:$0xff]
      %v615 = vld [vmem:[%s553 + $0x91] sm:$0xff]
      %v616 = vld [vmem:[%s553 + $0x99] sm:$0xff]
      %v617 = vld [vmem:[%s553 + $0xa9] sm:$0xff]
      %v618 = vld [vmem:[%s553 + $0xb1] sm:$0xff]
      %v619 = vperm.slane %v266, 7
      %v620 = vmul.f32 %v603, %v619
      %v621 = vmul.f32 %v604, %v619
      %v622 = vmul.f32 %v605, %v619
      %v623 = vmul.f32 %v606, %v619
      %v624 = vmul.f32 %v607, %v619
      %v625 = vmul.f32 %v608, %v619
      %v626 = vmul.f32 %v609, %v619
      %v627 = vmul.f32 %v610, %v619
      %v628 = vmul.f32 %v611, %v619
      %v629 = vmul.f32 %v612, %v619
      %v630 = vmul.f32 %v613, %v619
      %v631 = vmul.f32 %v614, %v619
      %v632 = vmul.f32 %v615, %v619
      %v633 = vmul.f32 %v616, %v619
      %v634 = vmul.f32 %v617, %v619
      %v635 = vmul.f32 %v618, %v619
      %v636 = vadd.f32 %v587, %v620
      %v637 = vadd.f32 %v588, %v621
      %v638 = vadd.f32 %v589, %v622
      %v639 = vadd.f32 %v590, %v623
      %v640 = vadd.f32 %v591, %v624
      %v641 = vadd.f32 %v592, %v625
      %v642 = vadd.f32 %v593, %v626
      %v643 = vadd.f32 %v594, %v627
      %v644 = vadd.f32 %v595, %v628
      %v645 = vadd.f32 %v596, %v629
      %v646 = vadd.f32 %v597, %v630
      %v647 = vadd.f32 %v598, %v631
      %v648 = vadd.f32 %v599, %v632
      %v649 = vadd.f32 %v600, %v633
      %v650 = vadd.f32 %v601, %v634
      %v651 = vadd.f32 %v602, %v635
      %v652 = vld [vmem:[%s553 + $0x2] sm:$0xff]
      %v653 = vld [vmem:[%s553 + $0xa] sm:$0xff]
      %v654 = vld [vmem:[%s553 + $0x1a] sm:$0xff]
      %v655 = vld [vmem:[%s553 + $0x22] sm:$0xff]
      %v656 = vld [vmem:[%s553 + $0x32] sm:$0xff]
      %v657 = vld [vmem:[%s553 + $0x3a] sm:$0xff]
      %v658 = vld [vmem:[%s553 + $0x4a] sm:$0xff]
      %v659 = vld [vmem:[%s553 + $0x52] sm:$0xff]
      %v660 = vld [vmem:[%s553 + $0x62] sm:$0xff]
      %v661 = vld [vmem:[%s553 + $0x6a] sm:$0xff]
      %v662 = vld [vmem:[%s553 + $0x7a] sm:$0xff]
      %v663 = vld [vmem:[%s553 + $0x82] sm:$0xff]
      %v664 = vld [vmem:[%s553 + $0x92] sm:$0xff]
      %v665 = vld [vmem:[%s553 + $0x9a] sm:$0xff]
      %v666 = vld [vmem:[%s553 + $0xaa] sm:$0xff]
      %v667 = vld [vmem:[%s553 + $0xb2] sm:$0xff]
      %v668 = vperm.slane %v267, 0
      %v669 = vmul.f32 %v652, %v668
      %v670 = vmul.f32 %v653, %v668
      %v671 = vmul.f32 %v654, %v668
      %v672 = vmul.f32 %v655, %v668
      %v673 = vmul.f32 %v656, %v668
      %v674 = vmul.f32 %v657, %v668
      %v675 = vmul.f32 %v658, %v668
      %v676 = vmul.f32 %v659, %v668
      %v677 = vmul.f32 %v660, %v668
      %v678 = vmul.f32 %v661, %v668
      %v679 = vmul.f32 %v662, %v668
      %v680 = vmul.f32 %v663, %v668
      %v681 = vmul.f32 %v664, %v668
      %v682 = vmul.f32 %v665, %v668
      %v683 = vmul.f32 %v666, %v668
      %v684 = vmul.f32 %v667, %v668
      %v685 = vadd.f32 %v636, %v669
      %v686 = vadd.f32 %v637, %v670
      %v687 = vadd.f32 %v638, %v671
      %v688 = vadd.f32 %v639, %v672
      %v689 = vadd.f32 %v640, %v673
      %v690 = vadd.f32 %v641, %v674
      %v691 = vadd.f32 %v642, %v675
      %v692 = vadd.f32 %v643, %v676
      %v693 = vadd.f32 %v644, %v677
      %v694 = vadd.f32 %v645, %v678
      %v695 = vadd.f32 %v646, %v679
      %v696 = vadd.f32 %v647, %v680
      %v697 = vadd.f32 %v648, %v681
      %v698 = vadd.f32 %v649, %v682
      %v699 = vadd.f32 %v650, %v683
      %v700 = vadd.f32 %v651, %v684
      %v701 = vpack.c.bf16 %v686, %v685
      %v702 = vpack.c.bf16 %v688, %v687
      %v703 = vpack.c.bf16 %v690, %v689
      %v704 = vpack.c.bf16 %v692, %v691
      %v705 = vpack.c.bf16 %v694, %v693
      %v706 = vpack.c.bf16 %v696, %v695
      %v707 = vpack.c.bf16 %v698, %v697
      %v708 = vpack.c.bf16 %v700, %v699
      %v709 = vld [vmem:[%s2] sm:$0xf]
      %v710 = vld [vmem:[%s2 + $0x4] sm:$0xf]
      %v711 = vld [vmem:[%s2 + $0x8] sm:$0xf]
      %v712 = vld [vmem:[%s2 + $0xc] sm:$0xf]
      %v713 = vld [vmem:[%s2 + $0x10] sm:$0xf]
      %v714 = vld [vmem:[%s2 + $0x14] sm:$0xf]
      %v715 = vld [vmem:[%s2 + $0x18] sm:$0xf]
      %v716 = vld [vmem:[%s2 + $0x1c] sm:$0xf]
      %v717 = vld [vmem:[%s2 + $0x20] sm:$0xf]
      %v718 = vld [vmem:[%s2 + $0x24] sm:$0xf]
      %v719 = vld [vmem:[%s2 + $0x28] sm:$0xf]
      %v720 = vld [vmem:[%s2 + $0x2c] sm:$0xf]
      %v721 = vld [vmem:[%s2 + $0x30] sm:$0xf]
      %v722 = vld [vmem:[%s2 + $0x34] sm:$0xf]
      %v723 = vld [vmem:[%s2 + $0x38] sm:$0xf]
      %v724 = vld [vmem:[%s2 + $0x3c] sm:$0xf]
      %v741 = vunpack.c.l.b16 %v709
      %v742 = vunpack.c.l.b16 %v710
      %v743 = vunpack.c.l.b16 %v711
      %v744 = vunpack.c.l.b16 %v712
      %v745 = vunpack.c.l.b16 %v713
      %v746 = vunpack.c.l.b16 %v714
      %v747 = vunpack.c.l.b16 %v715
      %v748 = vunpack.c.l.b16 %v716
      %v749 = vunpack.c.l.b16 %v717
      %v750 = vunpack.c.l.b16 %v718
      %v751 = vunpack.c.l.b16 %v719
      %v752 = vunpack.c.l.b16 %v720
      %v753 = vunpack.c.l.b16 %v721
      %v754 = vunpack.c.l.b16 %v722
      %v755 = vunpack.c.l.b16 %v723
      %v756 = vunpack.c.l.b16 %v724
      %v757 = vpack.c.b16 %v742, %v741
      %v758 = vpack.c.b16 %v744, %v743
      %v759 = vpack.c.b16 %v746, %v745
      %v760 = vpack.c.b16 %v748, %v747
      %v761 = vpack.c.b16 %v750, %v749
      %v762 = vpack.c.b16 %v752, %v751
      %v763 = vpack.c.b16 %v754, %v753
      %v764 = vpack.c.b16 %v756, %v755
      %773 = vmatpush.bf16.msra.mxu0 %v764
      %774 = vmatpush.bf16.msra.mxu0 %v763
      %775 = vmatpush.bf16.msra.mxu0 %v762
      %776 = vmatpush.bf16.msra.mxu0 %v761
      %777 = vmatpush.bf16.msra.mxu0 %v760
      %778 = vmatpush.bf16.msra.mxu0 %v759
      %779 = vmatpush.bf16.msra.mxu0 %v758
      %780 = vmatpush.bf16.msra.mxu0 %v757
      %781 = vmatmul.bf16.gmra.mxu0 %v701
      %v782 = vpop.f32.mrf.mxu0
      %v783 = vadd.f32 0.0, %v782
      %v784 = vpop.f32.mrf.mxu0
      %v785 = vadd.f32 0.0, %v784
      %786 = vmatmul.bf16.gmra.mxu0 %v702
      %v787 = vpop.f32.mrf.mxu0
      %v788 = vadd.f32 0.0, %v787
      %v789 = vpop.f32.mrf.mxu0
      %v790 = vadd.f32 0.0, %v789
      %791 = vmatmul.bf16.gmra.mxu0 %v703
      %v792 = vpop.f32.mrf.mxu0
      %v793 = vadd.f32 0.0, %v792
      %v794 = vpop.f32.mrf.mxu0
      %v795 = vadd.f32 0.0, %v794
      %796 = vmatmul.bf16.gmra.mxu0 %v704
      %v797 = vpop.f32.mrf.mxu0
      %v798 = vadd.f32 0.0, %v797
      %v799 = vpop.f32.mrf.mxu0
      %v800 = vadd.f32 0.0, %v799
      %801 = vmatmul.bf16.gmra.mxu0 %v705
      %v802 = vpop.f32.mrf.mxu0
      %v803 = vadd.f32 0.0, %v802
      %v804 = vpop.f32.mrf.mxu0
      %v805 = vadd.f32 0.0, %v804
      %806 = vmatmul.bf16.gmra.mxu0 %v706
      %v807 = vpop.f32.mrf.mxu0
      %v808 = vadd.f32 0.0, %v807
      %v809 = vpop.f32.mrf.mxu0
      %v810 = vadd.f32 0.0, %v809
      %811 = vmatmul.bf16.gmra.mxu0 %v707
      %v812 = vpop.f32.mrf.mxu0
      %v813 = vadd.f32 0.0, %v812
      %v814 = vpop.f32.mrf.mxu0
      %v815 = vadd.f32 0.0, %v814
      %816 = vmatmul.bf16.gmra.mxu0 %v708
      %v817 = vpop.f32.mrf.mxu0
      %v818 = vadd.f32 0.0, %v817
      %v819 = vpop.f32.mrf.mxu0
      %v820 = vadd.f32 0.0, %v819
      %821 = vdwg.mxu0
      %822 = vst [vmem:[%s255] sm:$0xff] %v783
      %823 = vst [vmem:[%s255 + $0x8] sm:$0xff] %v785
      %824 = vst [vmem:[%s255 + $0x10] sm:$0xff] %v788
      %825 = vst [vmem:[%s255 + $0x18] sm:$0xff] %v790
      %826 = vst [vmem:[%s255 + $0x20] sm:$0xff] %v793
      %827 = vst [vmem:[%s255 + $0x28] sm:$0xff] %v795
      %828 = vst [vmem:[%s255 + $0x30] sm:$0xff] %v798
      %829 = vst [vmem:[%s255 + $0x38] sm:$0xff] %v800
      %830 = vst [vmem:[%s255 + $0x40] sm:$0xff] %v803
      %831 = vst [vmem:[%s255 + $0x48] sm:$0xff] %v805
      %832 = vst [vmem:[%s255 + $0x50] sm:$0xff] %v808
      %833 = vst [vmem:[%s255 + $0x58] sm:$0xff] %v810
      %834 = vst [vmem:[%s255 + $0x60] sm:$0xff] %v813
      %835 = vst [vmem:[%s255 + $0x68] sm:$0xff] %v815
      %836 = vst [vmem:[%s255 + $0x70] sm:$0xff] %v818
      %837 = vst [vmem:[%s255 + $0x78] sm:$0xff] %v820
      %p838 = scmp.eq.s32.totalorder %s22, 0
      // Predicated region
      $region33: #{dwconv2d_bn.2} parent=31 // pred_check
        %p839 = pneg %p838
      $region34: #{dwconv2d_bn.2} parent=31 // pred_check_branch
        %841 = sbr.rel (%p839) target = $region36
      $region35: #{dwconv2d_bn.2} parent=31 // pred_region
        %842 = vst [vmem:[%s261] sm:$0x1] 0.0
        %843 = vst [vmem:[%s264] sm:$0x1] 0.0
      $region36: #{dwconv2d_bn.2} parent=31 // pred_fallthru
        _
      %v844 = vld [vmem:[%s261] sm:$0x1]
      %v845 = vadd.f32 %v783, %v785
      %v846 = vadd.f32 %v845, %v788
      %v847 = vadd.f32 %v846, %v790
      %v848 = vadd.f32 %v847, %v793
      %v849 = vadd.f32 %v848, %v795
      %v850 = vadd.f32 %v849, %v798
      %v851 = vadd.f32 %v850, %v800
      %v852 = vadd.f32 %v851, %v803
      %v853 = vadd.f32 %v852, %v805
      %v854 = vadd.f32 %v853, %v808
      %v855 = vadd.f32 %v854, %v810
      %v856 = vadd.f32 %v855, %v813
      %v857 = vadd.f32 %v856, %v815
      %v858 = vadd.f32 %v857, %v818
      %v859 = vadd.f32 %v858, %v820
      %v860 = vrot.slane %v859, 4
      %v861 = vadd.f32 %v859, %v860
      %v862 = vrot.slane %v861, 2
      %v863 = vadd.f32 %v861, %v862
      %v864 = vrot.slane %v863, 1
      %v865 = vadd.f32 %v863, %v864
      %v866 = vadd.f32 %v844, %v865
      %867 = vst [vmem:[%s261] sm:$0x1] %v866
      %v868 = vld [vmem:[%s264] sm:$0x1]
      %v869 = vmul.f32 %v783, %v783
      %v870 = vmul.f32 %v785, %v785
      %v871 = vmul.f32 %v788, %v788
      %v872 = vmul.f32 %v790, %v790
      %v873 = vmul.f32 %v793, %v793
      %v874 = vmul.f32 %v795, %v795
      %v875 = vmul.f32 %v798, %v798
      %v876 = vmul.f32 %v800, %v800
      %v877 = vmul.f32 %v803, %v803
      %v878 = vmul.f32 %v805, %v805
      %v879 = vmul.f32 %v808, %v808
      %v880 = vmul.f32 %v810, %v810
      %v881 = vmul.f32 %v813, %v813
      %v882 = vmul.f32 %v815, %v815
      %v883 = vmul.f32 %v818, %v818
      %v884 = vmul.f32 %v820, %v820
      %v885 = vadd.f32 %v869, %v870
      %v886 = vadd.f32 %v885, %v871
      %v887 = vadd.f32 %v886, %v872
      %v888 = vadd.f32 %v887, %v873
      %v889 = vadd.f32 %v888, %v874
      %v890 = vadd.f32 %v889, %v875
      %v891 = vadd.f32 %v890, %v876
      %v892 = vadd.f32 %v891, %v877
      %v893 = vadd.f32 %v892, %v878
      %v894 = vadd.f32 %v893, %v879
      %v895 = vadd.f32 %v894, %v880
      %v896 = vadd.f32 %v895, %v881
      %v897 = vadd.f32 %v896, %v882
      %v898 = vadd.f32 %v897, %v883
      %v899 = vadd.f32 %v898, %v884
      %v900 = vrot.slane %v899, 4
      %v901 = vadd.f32 %v899, %v900
      %v902 = vrot.slane %v901, 2
      %v903 = vadd.f32 %v901, %v902
      %v904 = vrot.slane %v903, 1
      %v905 = vadd.f32 %v903, %v904
      %v906 = vadd.f32 %v868, %v905
      %907 = vst [vmem:[%s264] sm:$0x1] %v906
      %s908 = smul.u32 %s21, 2
      %s909 = sadd.s32 %s908, %s22
      %s910 = smul.u32 16, %s909
      %p911 = scmp.lt.s32.totalorder %s910, 63
      %s912 = scalar_select %p911, %s910, 63
      %s913 = smul.addr %s912, 8
      %s914 = scalar_lea.vmem %s3, %s913
      %p915 = scmp.lt.s32.totalorder %s21, 1
      %s916 = scalar_select %p915, %s21, 1
      %s917 = scalar_lea.vmem %s4, %s916
      %p918 = scmp.lt.s32.totalorder %s21, 1
      %s919 = scalar_select %p918, %s21, 1
      %s920 = scalar_lea.vmem %s5, %s919
      // Predicated region
      $region37: #{dwconv2d_bn.2} parent=31 // pred_check
        %p921 = pneg %p119
      $region38: #{dwconv2d_bn.2} parent=31 // pred_check_branch
        %923 = sbr.rel (%p921) target = $region40
      $region39: #{dwconv2d_bn.2} parent=31 // pred_region
        %s924 = smul.u32 %s21, 2
        %s925 = sadd.s32 %s924, %s22
        %s926 = smul.u32 16, %s925
      $region40: #{dwconv2d_bn.2} parent=31 // pred_fallthru
        _
      // Predicated region
      $region41: #{dwconv2d_bn.2} parent=31 // pred_check
        %p927 = pneg %p145
      $region42: #{dwconv2d_bn.2} parent=31 // pred_check_branch
        %929 = sbr.rel (%p927) target = $region44
      $region43: #{dwconv2d_bn.2} parent=31 // pred_region
        _
      $region44: #{dwconv2d_bn.2} parent=31 // pred_fallthru
        _
      // Predicated region
      $region45: #{dwconv2d_bn.2} parent=31 // pred_check
        %p930 = pneg %p171
      $region46: #{dwconv2d_bn.2} parent=31 // pred_check_branch
        %932 = sbr.rel (%p930) target = $region48
      $region47: #{dwconv2d_bn.2} parent=31 // pred_region
        _
      $region48: #{dwconv2d_bn.2} parent=31 // pred_fallthru
        _
    $region32: #{dwconv2d_bn.2} parent=5 // pred_fallthru
      _
    %p933 = scmp.le.s32.totalorder 2, %s12
    // Predicated region
    $region49: #{dwconv2d_bn.2} parent=5 // pred_check
      %p934 = pneg %p933
    $region50: #{dwconv2d_bn.2} parent=5 // pred_check_branch
      %936 = sbr.rel (%p934) target = $region52
    $region51: #{dwconv2d_bn.2} parent=5 // pred_region
      %s937 = ssub.s32 %s12, 2
      // Predicated region
      $region53: #{dwconv2d_bn.2} parent=51 // pred_check
        %p938 = pneg %p125
      $region54: #{dwconv2d_bn.2} parent=51 // pred_check_branch
        %940 = sbr.rel (%p938) target = $region56
      $region55: #{dwconv2d_bn.2} parent=51 // pred_region
        %s941 = smul.u32 %s23, 2
        %s942 = sadd.s32 %s941, %s24
        %s943 = smul.u32 16, %s942
        %p944 = scmp.lt.s32.totalorder %s943, 63
        %s945 = scalar_select %p944, %s943, 63
        %s946 = smul.addr %s945, 8
        %s947 = scalar_lea.vmem %s3, %s946
      $region56: #{dwconv2d_bn.2} parent=51 // pred_fallthru
        _
      // Predicated region
      $region57: #{dwconv2d_bn.2} parent=51 // pred_check
        %p948 = pneg %p151
      $region58: #{dwconv2d_bn.2} parent=51 // pred_check_branch
        %950 = sbr.rel (%p948) target = $region60
      $region59: #{dwconv2d_bn.2} parent=51 // pred_region
        %p951 = scmp.lt.s32.totalorder %s23, 1
        %s952 = scalar_select %p951, %s23, 1
        %s953 = scalar_lea.vmem %s4, %s952
      $region60: #{dwconv2d_bn.2} parent=51 // pred_fallthru
        _
      // Predicated region
      $region61: #{dwconv2d_bn.2} parent=51 // pred_check
        %p954 = pneg %p177
      $region62: #{dwconv2d_bn.2} parent=51 // pred_check_branch
        %956 = sbr.rel (%p954) target = $region64
      $region63: #{dwconv2d_bn.2} parent=51 // pred_region
        %p957 = scmp.lt.s32.totalorder %s23, 1
        %s958 = scalar_select %p957, %s23, 1
        %s959 = scalar_lea.vmem %s5, %s958
      $region64: #{dwconv2d_bn.2} parent=51 // pred_fallthru
        _
    $region52: #{dwconv2d_bn.2} parent=5 // pred_fallthru
      _
  $region6: #{dwconv2d_bn.2} parent=0 // loop_footer
    %s16 = sadd.s32 1, %s12
  $region7: #{dwconv2d_bn.2} parent=0 // loop_footer_branch
    %11 = sbr.rel target = $region3
  $region8: #{dwconv2d_bn.2} parent=0 // loop_exit
    _

</llo_original>
